<compile_context>
chip_gen: v6e
topology: v6e:2x2x1
jax: 0.10.0
libtpu: 0.0.40
codegen_flags: <defaults>
</compile_context>

<pallas_src>
import jax
import jax.numpy as jnp
from jax.experimental import pallas as pl
from jax.experimental.pallas import tpu as pltpu


def _round_up(x: int, m: int) -> int:
    return (x + m - 1) // m * m


def _dagma_mlp_kernel(x_ref, w1_ref, b1_ref, *rest):
    """One (variable tile, batch tile) grid cell of the DagmaMLP forward.

    x_ref  : (tile_n, d_pad)             input rows (zero-padded features)
    w1_ref : (n_groups, d_pad, g*tile_d)  fc1 weights, grouped hidden channels
    b1_ref : (n_groups, g*tile_d)         fc1 bias (float32)
    rest   : per LocallyConnected layer a (m_out, m_in, tile_d) weight ref and
             a (m_out, tile_d) bias ref, then the (tile_n, tile_d) output ref.
    """
    n_lc = (len(rest) - 1) // 2
    lc_refs = rest[:2 * n_lc]
    o_ref = rest[2 * n_lc]

    x = x_ref[...]
    b1 = b1_ref[...]
    n_groups = w1_ref.shape[0]
    tile_d = o_ref.shape[1]
    g = w1_ref.shape[2] // tile_d

    if n_lc == 0:
        # dims == [d, 1]: no LocallyConnected layers; forward is fc1 + squeeze.
        h0 = jnp.dot(x, w1_ref[0], preferred_element_type=jnp.float32)
        o_ref[...] = h0 + b1[0:1, :]
        return

    # --- fc1 + sigmoid + first LocallyConnected layer, fused per group ------
    # Each group's matmul has N = g*tile_d (>= 256 where possible); its result
    # is sigmoided and folded straight into the m_out1 accumulators, so at most
    # one (tile_n, g*tile_d) f32 slab is live at a time.
    w_lc1 = lc_refs[0][...]            # (m_out1, m1, tile_d)
    b_lc1 = lc_refs[1][...]            # (m_out1, tile_d)
    m_out1, m1 = w_lc1.shape[0], w_lc1.shape[1]

    accs = [None] * m_out1
    for gi in range(n_groups):
        hg = jnp.dot(x, w1_ref[gi], preferred_element_type=jnp.float32)
        zg = jax.nn.sigmoid(hg + b1[gi:gi + 1, :])
        for kl in range(g):
            k = gi * g + kl
            if k >= m1:                # zero-padded hidden channels: skip
                continue
            zk = zg[:, kl * tile_d:(kl + 1) * tile_d]
            for o in range(m_out1):
                term = zk * w_lc1[o:o + 1, k, :]
                accs[o] = term if accs[o] is None else accs[o] + term
    h = [accs[o] + b_lc1[o:o + 1, :] for o in range(m_out1)]

    # --- remaining LocallyConnected layers: lane-dense VPU multiply-accumulate
    for layer in range(1, n_lc):
        w = lc_refs[2 * layer][...]      # (m_out, m_in, tile_d)
        b = lc_refs[2 * layer + 1][...]  # (m_out, tile_d)
        m_out, m_in = w.shape[0], w.shape[1]
        z = [jax.nn.sigmoid(c) for c in h]
        new_h = []
        for o in range(m_out):
            acc = z[0] * w[o:o + 1, 0, :]
            for k in range(1, m_in):
                acc = acc + z[k] * w[o:o + 1, k, :]
            new_h.append(acc + b[o:o + 1, :])
        h = new_h

    # squeeze(dim=2): last layer has m_out == 1 -> one contiguous lane-dense
    # store of the surviving slab.
    o_ref[...] = h[0]


def dagma_mlp_forward(x, fc1_weight, fc1_bias, lc_weights, lc_biases, dims,
                      tile_n=None, tile_d=None, matmul_dtype=jnp.float32):
    """Pallas TPU forward mirroring DagmaMLP.forward (float32 compute).

    x          : (n, d)
    fc1_weight : (d*m1, d)   torch nn.Linear layout, out index = j*m1 + k
    fc1_bias   : (d*m1,)
    lc_weights : list of (d, m_in, m_out)
    lc_biases  : list of (d, m_out)
    dims       : [d, m1, ..., 1]
    matmul_dtype : dtype for the fc1 MXU matmul (f32 or bf16); everything after
                   the matmul stays float32.
    """
    n, d = x.shape
    assert len(dims) >= 2 and d == dims[0] and dims[-1] == 1
    assert len(lc_weights) == len(lc_biases) == len(dims) - 2
    m1 = dims[1]
    f32 = jnp.float32
    mm_dtype = jnp.dtype(matmul_dtype)
    mm_bytes = mm_dtype.itemsize

    # ---- lane-dense variable axis & candidate tile sizes --------------------
    d_pad = _round_up(d, 128)
    d_cands = [t for t in range(d_pad, 0, -128) if d_pad % t == 0]  # descending
    if tile_d is None:
        tile_d = next((t for t in d_cands if t <= 512), d_cands[-1])
    assert tile_d % 128 == 0 and d_pad % tile_d == 0

    if tile_n is None:
        if n >= 512:
            tile_n = 256
        else:
            # Aim for exactly two batch tiles (both v7x TensorCores get work)
            # while keeping the tile as large as possible.
            tile_n = max(8, _round_up(-(-n // 2), 8))
    assert tile_n % 8 == 0

    # ---- generation-aware VMEM budget; shrink tiles until estimate fits -----
    def _vmem_capacity_bytes():
        try:
            return int(pltpu.get_tpu_info().vmem_capacity_bytes)
        except Exception:
            return 64 * 1024 * 1024          # conservative (v7x-sized) fallback

    vmem_budget = int(_vmem_capacity_bytes() * 0.8)

    def _plan(t_n, t_d):
        # Group hidden channels so each MXU call has N = g*t_d >= 256.
        g_ = max(1, min(m1, 256 // t_d))
        n_groups_ = -(-m1 // g_)
        w1_blk = n_groups_ * d_pad * g_ * t_d * mm_bytes
        b1_blk = n_groups_ * g_ * t_d * 4
        lc_blk = sum((dims[l + 1] * dims[l + 2] + dims[l + 2]) * t_d * 4
                     for l in range(len(dims) - 2))
        io_blk = t_n * d_pad * mm_bytes + t_n * t_d * 4
        m_out1 = dims[2] if len(dims) > 2 else 1
        live = t_n * t_d * (g_ + m_out1 + 2) * 4
        return g_, n_groups_, 2 * (w1_blk + b1_blk + lc_blk + io_blk) + live

    while True:
        g, n_groups, est = _plan(tile_n, tile_d)
        if est <= vmem_budget or (tile_d == 128 and tile_n == 8):
            break
        if tile_d > 128:
            tile_d = next(t for t in d_cands if t < tile_d)
        else:
            tile_n = max(8, _round_up(tile_n // 2, 8))

    d_tiles = d_pad // tile_d
    n_pad = _round_up(max(n, tile_n), tile_n)
    n_tiles = n_pad // tile_n
    m1_pad = n_groups * g

    # ---- re-layout operands (wrapper-side glue, done once) ------------------
    x_p = jnp.zeros((n_pad, d_pad), mm_dtype).at[:n, :d].set(
        jnp.asarray(x, mm_dtype))

    # fc1 weight -> contiguous per-d-tile blocks (d_tiles, n_groups, d_pad,
    # g*tile_d) with [jb, gi, i, kl*tile_d + jl] = W1[(jb*tile_d+jl)*m1 + gi*g+kl, i]
    w1 = jnp.asarray(fc1_weight, f32).reshape(d, m1, d)               # (j, k, i)
    w1_full = jnp.zeros((d_pad, m1_pad, d_pad), f32).at[:d, :m1, :d].set(w1)
    w1_blkd = (w1_full.reshape(d_tiles, tile_d, n_groups, g, d_pad)
               .transpose(0, 2, 4, 3, 1)
               .reshape(d_tiles, n_groups, d_pad, g * tile_d)
               .astype(mm_dtype))

    b1v = jnp.asarray(fc1_bias, f32).reshape(d, m1)                   # (j, k)
    b1_full = jnp.zeros((d_pad, m1_pad), f32).at[:d, :m1].set(b1v)
    b1_blkd = (b1_full.reshape(d_tiles, tile_d, n_groups, g)
               .transpose(0, 2, 3, 1)
               .reshape(d_tiles, n_groups, g * tile_d))

    lc_ops = []
    for w, b in zip(lc_weights, lc_biases):
        w = jnp.asarray(w, f32)                                       # (d, m_in, m_out)
        b = jnp.asarray(b, f32)                                       # (d, m_out)
        m_in, m_out = int(w.shape[1]), int(w.shape[2])
        w_full = jnp.zeros((d_pad, m_in, m_out), f32).at[:d].set(w)
        w_blkd = (w_full.reshape(d_tiles, tile_d, m_in, m_out)
                  .transpose(0, 3, 2, 1))          # (d_tiles, m_out, m_in, tile_d)
        b_full = jnp.zeros((d_pad, m_out), f32).at[:d].set(b)
        b_blkd = (b_full.reshape(d_tiles, tile_d, m_out)
                  .transpose(0, 2, 1))             # (d_tiles, m_out, tile_d)
        lc_ops.append((w_blkd, b_blkd, m_in, m_out))

    # ---- grid & specs: weight-stationary (d-tile outer, batch inner) --------
    grid = (d_tiles, n_tiles)
    in_specs = [
        pl.BlockSpec((tile_n, d_pad), lambda jb, i: (i, 0)),
        pl.BlockSpec((None, n_groups, d_pad, g * tile_d),
                     lambda jb, i: (jb, 0, 0, 0)),
        pl.BlockSpec((None, n_groups, g * tile_d), lambda jb, i: (jb, 0, 0)),
    ]
    operands = [x_p, w1_blkd, b1_blkd]
    for w_blkd, b_blkd, m_in, m_out in lc_ops:
        in_specs.append(pl.BlockSpec((None, m_out, m_in, tile_d),
                                     lambda jb, i: (jb, 0, 0, 0)))
        in_specs.append(pl.BlockSpec((None, m_out, tile_d),
                                     lambda jb, i: (jb, 0, 0)))
        operands += [w_blkd, b_blkd]
    out_spec = pl.BlockSpec((tile_n, tile_d), lambda jb, i: (i, jb))

    out = pl.pallas_call(
        _dagma_mlp_kernel,
        out_shape=jax.ShapeDtypeStruct((n_pad, d_pad), f32),
        grid_spec=pltpu.PrefetchScalarGridSpec(
            num_scalar_prefetch=0,
            grid=grid,
            in_specs=in_specs,
            out_specs=out_spec,
        ),
        compiler_params=pltpu.CompilerParams(
            dimension_semantics=("parallel", "parallel"),
            vmem_limit_bytes=vmem_budget,
        ),
    )(*operands)

    if n_pad == n and d_pad == d:
        return out
    return out[:n, :d]


def _reference_forward(x, fc1_weight, fc1_bias, lc_weights, lc_biases, dims):
    """Plain-JAX reference mirroring the PyTorch forward (highest precision)."""
    hi = jax.lax.Precision.HIGHEST
    h = jnp.dot(x, fc1_weight.T, precision=hi) + fc1_bias
    h = h.reshape(-1, dims[0], dims[1])
    for w, b in zip(lc_weights, lc_biases):
        z = jax.nn.sigmoid(h)
        h = jnp.einsum("ndk,dko->ndo", z, w, precision=hi) + b[None]
    return h[:, :, 0]


def _make_params(key, dims):
    d, m1 = dims[0], dims[1]
    keys = jax.random.split(key, 2 + 2 * (len(dims) - 2))
    # The module zero-inits fc1; use small random values so the kernel
    # actually exercises the matmuls.
    fc1_weight = 0.1 * jax.random.normal(keys[0], (d * m1, d), dtype=jnp.float32)
    fc1_bias = 0.1 * jax.random.normal(keys[1], (d * m1,), dtype=jnp.float32)
    lc_weights, lc_biases = [], []
    for li in range(len(dims) - 2):
        m_in, m_out = dims[li + 1], dims[li + 2]
        lc_weights.append(0.1 * jax.random.normal(
            keys[2 + 2 * li], (d, m_in, m_out), dtype=jnp.float32))
        lc_biases.append(0.1 * jax.random.normal(
            keys[3 + 2 * li], (d, m_out), dtype=jnp.float32))
    return fc1_weight, fc1_bias, lc_weights, lc_biases


if __name__ == "__main__":
    key = jax.random.PRNGKey(0)
    k0, k1, k2, k3 = jax.random.split(key, 4)

    # Config A: standard DAGMA shape dims = [d, m1, 1], float32 MXU path.
    dims_a = [8, 16, 1]
    n_a = 64
    x_a = jax.random.normal(k0, (n_a, dims_a[0]), dtype=jnp.float32)
    params_a = _make_params(k1, dims_a)
    out_a = jax.block_until_ready(dagma_mlp_forward(x_a, *params_a, dims_a))
    ref_a = _reference_forward(x_a, *params_a, dims_a)
    assert out_a.shape == (n_a, dims_a[0])
    assert jnp.allclose(out_a, ref_a, atol=1e-3, rtol=1e-3), "config A mismatch"

    # Config B: deeper MLP (two LocallyConnected layers), ragged batch/hidden
    # sizes, and the bfloat16 MXU path for the fc1 matmul.
    dims_b = [8, 6, 4, 1]
    n_b = 20
    x_b = jax.random.normal(k2, (n_b, dims_b[0]), dtype=jnp.float32)
    params_b = _make_params(k3, dims_b)
    out_b = jax.block_until_ready(dagma_mlp_forward(
        x_b, *params_b, dims_b, matmul_dtype=jnp.bfloat16))
    ref_b = _reference_forward(x_b, *params_b, dims_b)
    assert out_b.shape == (n_b, dims_b[0])
    assert jnp.allclose(out_b, ref_b, atol=3e-2, rtol=3e-2), "config B mismatch"

    print("KERNEL_OK")
</pallas_src>

<mosaic_0001>
module attributes {stable_mosaic.version = 11 : i64} {
  func.func @_dagma_mlp_kernel(%arg0: i32, %arg1: i32, %arg2: memref<32x128xf32, #tpu.memory_space<vmem>>, %arg3: memref<1x8x128x256xf32, #tpu.memory_space<vmem>>, %arg4: memref<1x8x256xf32, #tpu.memory_space<vmem>>, %arg5: memref<1x1x16x128xf32, #tpu.memory_space<vmem>>, %arg6: memref<1x1x128xf32, #tpu.memory_space<vmem>>, %arg7: memref<32x128xf32, #tpu.memory_space<vmem>>) attributes {dimension_semantics = [#tpu.dimension_semantics<parallel>, #tpu.dimension_semantics<parallel>], iteration_bounds = array<i64: 1, 2>, scalar_prefetch = 0 : i64, scratch_operands = 0 : i64, tpu.core_type = #tpu.core_type<tc>, window_params = [{transform_indices = @transform_0, window_bounds = array<i64: 32, 128>}, {transform_indices = @transform_1, window_bounds = array<i64: 1, 8, 128, 256>}, {transform_indices = @transform_2, window_bounds = array<i64: 1, 8, 256>}, {transform_indices = @transform_3, window_bounds = array<i64: 1, 1, 16, 128>}, {transform_indices = @transform_4, window_bounds = array<i64: 1, 1, 128>}, {transform_indices = @transform_5, window_bounds = array<i64: 32, 128>}]} {
    %c0 = arith.constant 0 : index
    %c0_0 = arith.constant 0 : index
    %0 = vector.load %arg2[%c0, %c0_0] : memref<32x128xf32, #tpu.memory_space<vmem>>, vector<32x128xf32>
    %c0_1 = arith.constant 0 : index
    %c0_2 = arith.constant 0 : index
    %c0_3 = arith.constant 0 : index
    %1 = vector.load %arg4[%c0_1, %c0_2, %c0_3] : memref<1x8x256xf32, #tpu.memory_space<vmem>>, vector<1x8x256xf32>
    %2 = vector.shape_cast %1 : vector<1x8x256xf32> to vector<8x256xf32>
    %c0_4 = arith.constant 0 : index
    %c0_5 = arith.constant 0 : index
    %c0_6 = arith.constant 0 : index
    %c0_7 = arith.constant 0 : index
    %3 = vector.load %arg5[%c0_4, %c0_5, %c0_6, %c0_7] : memref<1x1x16x128xf32, #tpu.memory_space<vmem>>, vector<1x1x16x128xf32>
    %4 = vector.shape_cast %3 : vector<1x1x16x128xf32> to vector<1x16x128xf32>
    %c0_8 = arith.constant 0 : index
    %c0_9 = arith.constant 0 : index
    %c0_10 = arith.constant 0 : index
    %5 = vector.load %arg6[%c0_8, %c0_9, %c0_10] : memref<1x1x128xf32, #tpu.memory_space<vmem>>, vector<1x1x128xf32>
    %6 = vector.shape_cast %5 : vector<1x1x128xf32> to vector<1x128xf32>
    %c0_11 = arith.constant 0 : index
    %c0_12 = arith.constant 0 : index
    %c0_13 = arith.constant 0 : index
    %c0_14 = arith.constant 0 : index
    %7 = vector.load %arg3[%c0_11, %c0_12, %c0_13, %c0_14] : memref<1x8x128x256xf32, #tpu.memory_space<vmem>>, vector<1x1x128x256xf32>
    %8 = vector.shape_cast %7 : vector<1x1x128x256xf32> to vector<128x256xf32>
    %cst = arith.constant dense<0.000000e+00> : vector<32x256xf32>
    %9 = tpu.matmul %0, %8, %cst {dimension_numbers = #tpu.dot_dimension_numbers<[1], [0], [0], [1], [0, 0, 1, 1], [], []>} : vector<32x128xf32>, vector<128x256xf32>, vector<32x256xf32> -> vector<32x256xf32>
    %10 = vector.extract_strided_slice %2 {offsets = [0, 0], sizes = [1, 256], strides = [1, 1]} : vector<8x256xf32> to vector<1x256xf32>
    %11 = vector.broadcast %10 : vector<1x256xf32> to vector<32x256xf32>
    %12 = arith.addf %9, %11 : vector<32x256xf32>
    %13 = arith.negf %12 : vector<32x256xf32>
    %14 = math.exp %13 : vector<32x256xf32>
    %cst_15 = arith.constant 1.000000e+00 : f32
    %15 = vector.broadcast %cst_15 : f32 to vector<32x256xf32>
    %16 = arith.addf %15, %14 : vector<32x256xf32>
    %17 = arith.divf %15, %16 : vector<32x256xf32>
    %18 = vector.extract_strided_slice %17 {offsets = [0, 0], sizes = [32, 128], strides = [1, 1]} : vector<32x256xf32> to vector<32x128xf32>
    %19 = vector.extract_strided_slice %4 {offsets = [0, 0, 0], sizes = [1, 1, 128], strides = [1, 1, 1]} : vector<1x16x128xf32> to vector<1x1x128xf32>
    %20 = vector.shape_cast %19 : vector<1x1x128xf32> to vector<1x128xf32>
    %21 = vector.broadcast %20 : vector<1x128xf32> to vector<32x128xf32>
    %22 = arith.mulf %18, %21 : vector<32x128xf32>
    %23 = vector.extract_strided_slice %17 {offsets = [0, 128], sizes = [32, 128], strides = [1, 1]} : vector<32x256xf32> to vector<32x128xf32>
    %24 = vector.extract_strided_slice %4 {offsets = [0, 1, 0], sizes = [1, 1, 128], strides = [1, 1, 1]} : vector<1x16x128xf32> to vector<1x1x128xf32>
    %25 = vector.shape_cast %24 : vector<1x1x128xf32> to vector<1x128xf32>
    %26 = vector.broadcast %25 : vector<1x128xf32> to vector<32x128xf32>
    %27 = arith.mulf %23, %26 : vector<32x128xf32>
    %28 = arith.addf %22, %27 : vector<32x128xf32>
    %c0_16 = arith.constant 0 : index
    %c1 = arith.constant 1 : index
    %c0_17 = arith.constant 0 : index
    %c0_18 = arith.constant 0 : index
    %29 = vector.load %arg3[%c0_16, %c1, %c0_17, %c0_18] : memref<1x8x128x256xf32, #tpu.memory_space<vmem>>, vector<1x1x128x256xf32>
    %30 = vector.shape_cast %29 : vector<1x1x128x256xf32> to vector<128x256xf32>
    %cst_19 = arith.constant dense<0.000000e+00> : vector<32x256xf32>
    %31 = tpu.matmul %0, %30, %cst_19 {dimension_numbers = #tpu.dot_dimension_numbers<[1], [0], [0], [1], [0, 0, 1, 1], [], []>} : vector<32x128xf32>, vector<128x256xf32>, vector<32x256xf32> -> vector<32x256xf32>
    %32 = vector.extract_strided_slice %2 {offsets = [1, 0], sizes = [1, 256], strides = [1, 1]} : vector<8x256xf32> to vector<1x256xf32>
    %33 = vector.broadcast %32 : vector<1x256xf32> to vector<32x256xf32>
    %34 = arith.addf %31, %33 : vector<32x256xf32>
    %35 = arith.negf %34 : vector<32x256xf32>
    %36 = math.exp %35 : vector<32x256xf32>
    %cst_20 = arith.constant 1.000000e+00 : f32
    %37 = vector.broadcast %cst_20 : f32 to vector<32x256xf32>
    %38 = arith.addf %37, %36 : vector<32x256xf32>
    %39 = arith.divf %37, %38 : vector<32x256xf32>
    %40 = vector.extract_strided_slice %39 {offsets = [0, 0], sizes = [32, 128], strides = [1, 1]} : vector<32x256xf32> to vector<32x128xf32>
    %41 = vector.extract_strided_slice %4 {offsets = [0, 2, 0], sizes = [1, 1, 128], strides = [1, 1, 1]} : vector<1x16x128xf32> to vector<1x1x128xf32>
    %42 = vector.shape_cast %41 : vector<1x1x128xf32> to vector<1x128xf32>
    %43 = vector.broadcast %42 : vector<1x128xf32> to vector<32x128xf32>
    %44 = arith.mulf %40, %43 : vector<32x128xf32>
    %45 = arith.addf %28, %44 : vector<32x128xf32>
    %46 = vector.extract_strided_slice %39 {offsets = [0, 128], sizes = [32, 128], strides = [1, 1]} : vector<32x256xf32> to vector<32x128xf32>
    %47 = vector.extract_strided_slice %4 {offsets = [0, 3, 0], sizes = [1, 1, 128], strides = [1, 1, 1]} : vector<1x16x128xf32> to vector<1x1x128xf32>
    %48 = vector.shape_cast %47 : vector<1x1x128xf32> to vector<1x128xf32>
    %49 = vector.broadcast %48 : vector<1x128xf32> to vector<32x128xf32>
    %50 = arith.mulf %46, %49 : vector<32x128xf32>
    %51 = arith.addf %45, %50 : vector<32x128xf32>
    %c0_21 = arith.constant 0 : index
    %c2 = arith.constant 2 : index
    %c0_22 = arith.constant 0 : index
    %c0_23 = arith.constant 0 : index
    %52 = vector.load %arg3[%c0_21, %c2, %c0_22, %c0_23] : memref<1x8x128x256xf32, #tpu.memory_space<vmem>>, vector<1x1x128x256xf32>
    %53 = vector.shape_cast %52 : vector<1x1x128x256xf32> to vector<128x256xf32>
    %cst_24 = arith.constant dense<0.000000e+00> : vector<32x256xf32>
    %54 = tpu.matmul %0, %53, %cst_24 {dimension_numbers = #tpu.dot_dimension_numbers<[1], [0], [0], [1], [0, 0, 1, 1], [], []>} : vector<32x128xf32>, vector<128x256xf32>, vector<32x256xf32> -> vector<32x256xf32>
    %55 = vector.extract_strided_slice %2 {offsets = [2, 0], sizes = [1, 256], strides = [1, 1]} : vector<8x256xf32> to vector<1x256xf32>
    %56 = vector.broadcast %55 : vector<1x256xf32> to vector<32x256xf32>
    %57 = arith.addf %54, %56 : vector<32x256xf32>
    %58 = arith.negf %57 : vector<32x256xf32>
    %59 = math.exp %58 : vector<32x256xf32>
    %cst_25 = arith.constant 1.000000e+00 : f32
    %60 = vector.broadcast %cst_25 : f32 to vector<32x256xf32>
    %61 = arith.addf %60, %59 : vector<32x256xf32>
    %62 = arith.divf %60, %61 : vector<32x256xf32>
    %63 = vector.extract_strided_slice %62 {offsets = [0, 0], sizes = [32, 128], strides = [1, 1]} : vector<32x256xf32> to vector<32x128xf32>
    %64 = vector.extract_strided_slice %4 {offsets = [0, 4, 0], sizes = [1, 1, 128], strides = [1, 1, 1]} : vector<1x16x128xf32> to vector<1x1x128xf32>
    %65 = vector.shape_cast %64 : vector<1x1x128xf32> to vector<1x128xf32>
    %66 = vector.broadcast %65 : vector<1x128xf32> to vector<32x128xf32>
    %67 = arith.mulf %63, %66 : vector<32x128xf32>
    %68 = arith.addf %51, %67 : vector<32x128xf32>
    %69 = vector.extract_strided_slice %62 {offsets = [0, 128], sizes = [32, 128], strides = [1, 1]} : vector<32x256xf32> to vector<32x128xf32>
    %70 = vector.extract_strided_slice %4 {offsets = [0, 5, 0], sizes = [1, 1, 128], strides = [1, 1, 1]} : vector<1x16x128xf32> to vector<1x1x128xf32>
    %71 = vector.shape_cast %70 : vector<1x1x128xf32> to vector<1x128xf32>
    %72 = vector.broadcast %71 : vector<1x128xf32> to vector<32x128xf32>
    %73 = arith.mulf %69, %72 : vector<32x128xf32>
    %74 = arith.addf %68, %73 : vector<32x128xf32>
    %c0_26 = arith.constant 0 : index
    %c3 = arith.constant 3 : index
    %c0_27 = arith.constant 0 : index
    %c0_28 = arith.constant 0 : index
    %75 = vector.load %arg3[%c0_26, %c3, %c0_27, %c0_28] : memref<1x8x128x256xf32, #tpu.memory_space<vmem>>, vector<1x1x128x256xf32>
    %76 = vector.shape_cast %75 : vector<1x1x128x256xf32> to vector<128x256xf32>
    %cst_29 = arith.constant dense<0.000000e+00> : vector<32x256xf32>
    %77 = tpu.matmul %0, %76, %cst_29 {dimension_numbers = #tpu.dot_dimension_numbers<[1], [0], [0], [1], [0, 0, 1, 1], [], []>} : vector<32x128xf32>, vector<128x256xf32>, vector<32x256xf32> -> vector<32x256xf32>
    %78 = vector.extract_strided_slice %2 {offsets = [3, 0], sizes = [1, 256], strides = [1, 1]} : vector<8x256xf32> to vector<1x256xf32>
    %79 = vector.broadcast %78 : vector<1x256xf32> to vector<32x256xf32>
    %80 = arith.addf %77, %79 : vector<32x256xf32>
    %81 = arith.negf %80 : vector<32x256xf32>
    %82 = math.exp %81 : vector<32x256xf32>
    %cst_30 = arith.constant 1.000000e+00 : f32
    %83 = vector.broadcast %cst_30 : f32 to vector<32x256xf32>
    %84 = arith.addf %83, %82 : vector<32x256xf32>
    %85 = arith.divf %83, %84 : vector<32x256xf32>
    %86 = vector.extract_strided_slice %85 {offsets = [0, 0], sizes = [32, 128], strides = [1, 1]} : vector<32x256xf32> to vector<32x128xf32>
    %87 = vector.extract_strided_slice %4 {offsets = [0, 6, 0], sizes = [1, 1, 128], strides = [1, 1, 1]} : vector<1x16x128xf32> to vector<1x1x128xf32>
    %88 = vector.shape_cast %87 : vector<1x1x128xf32> to vector<1x128xf32>
    %89 = vector.broadcast %88 : vector<1x128xf32> to vector<32x128xf32>
    %90 = arith.mulf %86, %89 : vector<32x128xf32>
    %91 = arith.addf %74, %90 : vector<32x128xf32>
    %92 = vector.extract_strided_slice %85 {offsets = [0, 128], sizes = [32, 128], strides = [1, 1]} : vector<32x256xf32> to vector<32x128xf32>
    %93 = vector.extract_strided_slice %4 {offsets = [0, 7, 0], sizes = [1, 1, 128], strides = [1, 1, 1]} : vector<1x16x128xf32> to vector<1x1x128xf32>
    %94 = vector.shape_cast %93 : vector<1x1x128xf32> to vector<1x128xf32>
    %95 = vector.broadcast %94 : vector<1x128xf32> to vector<32x128xf32>
    %96 = arith.mulf %92, %95 : vector<32x128xf32>
    %97 = arith.addf %91, %96 : vector<32x128xf32>
    %c0_31 = arith.constant 0 : index
    %c4 = arith.constant 4 : index
    %c0_32 = arith.constant 0 : index
    %c0_33 = arith.constant 0 : index
    %98 = vector.load %arg3[%c0_31, %c4, %c0_32, %c0_33] : memref<1x8x128x256xf32, #tpu.memory_space<vmem>>, vector<1x1x128x256xf32>
    %99 = vector.shape_cast %98 : vector<1x1x128x256xf32> to vector<128x256xf32>
    %cst_34 = arith.constant dense<0.000000e+00> : vector<32x256xf32>
    %100 = tpu.matmul %0, %99, %cst_34 {dimension_numbers = #tpu.dot_dimension_numbers<[1], [0], [0], [1], [0, 0, 1, 1], [], []>} : vector<32x128xf32>, vector<128x256xf32>, vector<32x256xf32> -> vector<32x256xf32>
    %101 = vector.extract_strided_slice %2 {offsets = [4, 0], sizes = [1, 256], strides = [1, 1]} : vector<8x256xf32> to vector<1x256xf32>
    %102 = vector.broadcast %101 : vector<1x256xf32> to vector<32x256xf32>
    %103 = arith.addf %100, %102 : vector<32x256xf32>
    %104 = arith.negf %103 : vector<32x256xf32>
    %105 = math.exp %104 : vector<32x256xf32>
    %cst_35 = arith.constant 1.000000e+00 : f32
    %106 = vector.broadcast %cst_35 : f32 to vector<32x256xf32>
    %107 = arith.addf %106, %105 : vector<32x256xf32>
    %108 = arith.divf %106, %107 : vector<32x256xf32>
    %109 = vector.extract_strided_slice %108 {offsets = [0, 0], sizes = [32, 128], strides = [1, 1]} : vector<32x256xf32> to vector<32x128xf32>
    %110 = vector.extract_strided_slice %4 {offsets = [0, 8, 0], sizes = [1, 1, 128], strides = [1, 1, 1]} : vector<1x16x128xf32> to vector<1x1x128xf32>
    %111 = vector.shape_cast %110 : vector<1x1x128xf32> to vector<1x128xf32>
    %112 = vector.broadcast %111 : vector<1x128xf32> to vector<32x128xf32>
    %113 = arith.mulf %109, %112 : vector<32x128xf32>
    %114 = arith.addf %97, %113 : vector<32x128xf32>
    %115 = vector.extract_strided_slice %108 {offsets = [0, 128], sizes = [32, 128], strides = [1, 1]} : vector<32x256xf32> to vector<32x128xf32>
    %116 = vector.extract_strided_slice %4 {offsets = [0, 9, 0], sizes = [1, 1, 128], strides = [1, 1, 1]} : vector<1x16x128xf32> to vector<1x1x128xf32>
    %117 = vector.shape_cast %116 : vector<1x1x128xf32> to vector<1x128xf32>
    %118 = vector.broadcast %117 : vector<1x128xf32> to vector<32x128xf32>
    %119 = arith.mulf %115, %118 : vector<32x128xf32>
    %120 = arith.addf %114, %119 : vector<32x128xf32>
    %c0_36 = arith.constant 0 : index
    %c5 = arith.constant 5 : index
    %c0_37 = arith.constant 0 : index
    %c0_38 = arith.constant 0 : index
    %121 = vector.load %arg3[%c0_36, %c5, %c0_37, %c0_38] : memref<1x8x128x256xf32, #tpu.memory_space<vmem>>, vector<1x1x128x256xf32>
    %122 = vector.shape_cast %121 : vector<1x1x128x256xf32> to vector<128x256xf32>
    %cst_39 = arith.constant dense<0.000000e+00> : vector<32x256xf32>
    %123 = tpu.matmul %0, %122, %cst_39 {dimension_numbers = #tpu.dot_dimension_numbers<[1], [0], [0], [1], [0, 0, 1, 1], [], []>} : vector<32x128xf32>, vector<128x256xf32>, vector<32x256xf32> -> vector<32x256xf32>
    %124 = vector.extract_strided_slice %2 {offsets = [5, 0], sizes = [1, 256], strides = [1, 1]} : vector<8x256xf32> to vector<1x256xf32>
    %125 = vector.broadcast %124 : vector<1x256xf32> to vector<32x256xf32>
    %126 = arith.addf %123, %125 : vector<32x256xf32>
    %127 = arith.negf %126 : vector<32x256xf32>
    %128 = math.exp %127 : vector<32x256xf32>
    %cst_40 = arith.constant 1.000000e+00 : f32
    %129 = vector.broadcast %cst_40 : f32 to vector<32x256xf32>
    %130 = arith.addf %129, %128 : vector<32x256xf32>
    %131 = arith.divf %129, %130 : vector<32x256xf32>
    %132 = vector.extract_strided_slice %131 {offsets = [0, 0], sizes = [32, 128], strides = [1, 1]} : vector<32x256xf32> to vector<32x128xf32>
    %133 = vector.extract_strided_slice %4 {offsets = [0, 10, 0], sizes = [1, 1, 128], strides = [1, 1, 1]} : vector<1x16x128xf32> to vector<1x1x128xf32>
    %134 = vector.shape_cast %133 : vector<1x1x128xf32> to vector<1x128xf32>
    %135 = vector.broadcast %134 : vector<1x128xf32> to vector<32x128xf32>
    %136 = arith.mulf %132, %135 : vector<32x128xf32>
    %137 = arith.addf %120, %136 : vector<32x128xf32>
    %138 = vector.extract_strided_slice %131 {offsets = [0, 128], sizes = [32, 128], strides = [1, 1]} : vector<32x256xf32> to vector<32x128xf32>
    %139 = vector.extract_strided_slice %4 {offsets = [0, 11, 0], sizes = [1, 1, 128], strides = [1, 1, 1]} : vector<1x16x128xf32> to vector<1x1x128xf32>
    %140 = vector.shape_cast %139 : vector<1x1x128xf32> to vector<1x128xf32>
    %141 = vector.broadcast %140 : vector<1x128xf32> to vector<32x128xf32>
    %142 = arith.mulf %138, %141 : vector<32x128xf32>
    %143 = arith.addf %137, %142 : vector<32x128xf32>
    %c0_41 = arith.constant 0 : index
    %c6 = arith.constant 6 : index
    %c0_42 = arith.constant 0 : index
    %c0_43 = arith.constant 0 : index
    %144 = vector.load %arg3[%c0_41, %c6, %c0_42, %c0_43] : memref<1x8x128x256xf32, #tpu.memory_space<vmem>>, vector<1x1x128x256xf32>
    %145 = vector.shape_cast %144 : vector<1x1x128x256xf32> to vector<128x256xf32>
    %cst_44 = arith.constant dense<0.000000e+00> : vector<32x256xf32>
    %146 = tpu.matmul %0, %145, %cst_44 {dimension_numbers = #tpu.dot_dimension_numbers<[1], [0], [0], [1], [0, 0, 1, 1], [], []>} : vector<32x128xf32>, vector<128x256xf32>, vector<32x256xf32> -> vector<32x256xf32>
    %147 = vector.extract_strided_slice %2 {offsets = [6, 0], sizes = [1, 256], strides = [1, 1]} : vector<8x256xf32> to vector<1x256xf32>
    %148 = vector.broadcast %147 : vector<1x256xf32> to vector<32x256xf32>
    %149 = arith.addf %146, %148 : vector<32x256xf32>
    %150 = arith.negf %149 : vector<32x256xf32>
    %151 = math.exp %150 : vector<32x256xf32>
    %cst_45 = arith.constant 1.000000e+00 : f32
    %152 = vector.broadcast %cst_45 : f32 to vector<32x256xf32>
    %153 = arith.addf %152, %151 : vector<32x256xf32>
    %154 = arith.divf %152, %153 : vector<32x256xf32>
    %155 = vector.extract_strided_slice %154 {offsets = [0, 0], sizes = [32, 128], strides = [1, 1]} : vector<32x256xf32> to vector<32x128xf32>
    %156 = vector.extract_strided_slice %4 {offsets = [0, 12, 0], sizes = [1, 1, 128], strides = [1, 1, 1]} : vector<1x16x128xf32> to vector<1x1x128xf32>
    %157 = vector.shape_cast %156 : vector<1x1x128xf32> to vector<1x128xf32>
    %158 = vector.broadcast %157 : vector<1x128xf32> to vector<32x128xf32>
    %159 = arith.mulf %155, %158 : vector<32x128xf32>
    %160 = arith.addf %143, %159 : vector<32x128xf32>
    %161 = vector.extract_strided_slice %154 {offsets = [0, 128], sizes = [32, 128], strides = [1, 1]} : vector<32x256xf32> to vector<32x128xf32>
    %162 = vector.extract_strided_slice %4 {offsets = [0, 13, 0], sizes = [1, 1, 128], strides = [1, 1, 1]} : vector<1x16x128xf32> to vector<1x1x128xf32>
    %163 = vector.shape_cast %162 : vector<1x1x128xf32> to vector<1x128xf32>
    %164 = vector.broadcast %163 : vector<1x128xf32> to vector<32x128xf32>
    %165 = arith.mulf %161, %164 : vector<32x128xf32>
    %166 = arith.addf %160, %165 : vector<32x128xf32>
    %c0_46 = arith.constant 0 : index
    %c7 = arith.constant 7 : index
    %c0_47 = arith.constant 0 : index
    %c0_48 = arith.constant 0 : index
    %167 = vector.load %arg3[%c0_46, %c7, %c0_47, %c0_48] : memref<1x8x128x256xf32, #tpu.memory_space<vmem>>, vector<1x1x128x256xf32>
    %168 = vector.shape_cast %167 : vector<1x1x128x256xf32> to vector<128x256xf32>
    %cst_49 = arith.constant dense<0.000000e+00> : vector<32x256xf32>
    %169 = tpu.matmul %0, %168, %cst_49 {dimension_numbers = #tpu.dot_dimension_numbers<[1], [0], [0], [1], [0, 0, 1, 1], [], []>} : vector<32x128xf32>, vector<128x256xf32>, vector<32x256xf32> -> vector<32x256xf32>
    %170 = vector.extract_strided_slice %2 {offsets = [7, 0], sizes = [1, 256], strides = [1, 1]} : vector<8x256xf32> to vector<1x256xf32>
    %171 = vector.broadcast %170 : vector<1x256xf32> to vector<32x256xf32>
    %172 = arith.addf %169, %171 : vector<32x256xf32>
    %173 = arith.negf %172 : vector<32x256xf32>
    %174 = math.exp %173 : vector<32x256xf32>
    %cst_50 = arith.constant 1.000000e+00 : f32
    %175 = vector.broadcast %cst_50 : f32 to vector<32x256xf32>
    %176 = arith.addf %175, %174 : vector<32x256xf32>
    %177 = arith.divf %175, %176 : vector<32x256xf32>
    %178 = vector.extract_strided_slice %177 {offsets = [0, 0], sizes = [32, 128], strides = [1, 1]} : vector<32x256xf32> to vector<32x128xf32>
    %179 = vector.extract_strided_slice %4 {offsets = [0, 14, 0], sizes = [1, 1, 128], strides = [1, 1, 1]} : vector<1x16x128xf32> to vector<1x1x128xf32>
    %180 = vector.shape_cast %179 : vector<1x1x128xf32> to vector<1x128xf32>
    %181 = vector.broadcast %180 : vector<1x128xf32> to vector<32x128xf32>
    %182 = arith.mulf %178, %181 : vector<32x128xf32>
    %183 = arith.addf %166, %182 : vector<32x128xf32>
    %184 = vector.extract_strided_slice %177 {offsets = [0, 128], sizes = [32, 128], strides = [1, 1]} : vector<32x256xf32> to vector<32x128xf32>
    %185 = vector.extract_strided_slice %4 {offsets = [0, 15, 0], sizes = [1, 1, 128], strides = [1, 1, 1]} : vector<1x16x128xf32> to vector<1x1x128xf32>
    %186 = vector.shape_cast %185 : vector<1x1x128xf32> to vector<1x128xf32>
    %187 = vector.broadcast %186 : vector<1x128xf32> to vector<32x128xf32>
    %188 = arith.mulf %184, %187 : vector<32x128xf32>
    %189 = arith.addf %183, %188 : vector<32x128xf32>
    %190 = vector.broadcast %6 : vector<1x128xf32> to vector<32x128xf32>
    %191 = arith.addf %189, %190 : vector<32x128xf32>
    %c0_51 = arith.constant 0 : index
    %c0_52 = arith.constant 0 : index
    %192 = vector.load %arg7[%c0_51, %c0_52] : memref<32x128xf32, #tpu.memory_space<vmem>>, vector<32x128xf32>
    tpu.vector_store %arg7[%c0_51, %c0_52], %191 {strides = array<i32>} : memref<32x128xf32, #tpu.memory_space<vmem>>, vector<32x128xf32>,
    return
  }
  func.func @transform_0(%arg0: i32, %arg1: i32) -> (i32, i32) {
    %c0_i32 = arith.constant 0 : i32
    %c0_i32_0 = arith.constant 0 : i32
    return %arg1, %c0_i32 : i32, i32
  }
  func.func @transform_1(%arg0: i32, %arg1: i32) -> (i32, i32, i32, i32) {
    %c0_i32 = arith.constant 0 : i32
    %c0_i32_0 = arith.constant 0 : i32
    %c0_i32_1 = arith.constant 0 : i32
    %c0_i32_2 = arith.constant 0 : i32
    return %arg0, %c0_i32, %c0_i32_0, %c0_i32_1 : i32, i32, i32, i32
  }
  func.func @transform_2(%arg0: i32, %arg1: i32) -> (i32, i32, i32) {
    %c0_i32 = arith.constant 0 : i32
    %c0_i32_0 = arith.constant 0 : i32
    %c0_i32_1 = arith.constant 0 : i32
    return %arg0, %c0_i32, %c0_i32_0 : i32, i32, i32
  }
  func.func @transform_3(%arg0: i32, %arg1: i32) -> (i32, i32, i32, i32) {
    %c0_i32 = arith.constant 0 : i32
    %c0_i32_0 = arith.constant 0 : i32
    %c0_i32_1 = arith.constant 0 : i32
    %c0_i32_2 = arith.constant 0 : i32
    return %arg0, %c0_i32, %c0_i32_0, %c0_i32_1 : i32, i32, i32, i32
  }
  func.func @transform_4(%arg0: i32, %arg1: i32) -> (i32, i32, i32) {
    %c0_i32 = arith.constant 0 : i32
    %c0_i32_0 = arith.constant 0 : i32
    %c0_i32_1 = arith.constant 0 : i32
    return %arg0, %c0_i32, %c0_i32_0 : i32, i32, i32
  }
  func.func @transform_5(%arg0: i32, %arg1: i32) -> (i32, i32) {
    %c0_i32 = arith.constant 0 : i32
    return %arg1, %arg0 : i32, i32
  }
}

</mosaic_0001>

<llo_original>
// kernel: tpu_custom_call.1
$region0: #{tpu_custom_call.1}
  #allocation0 [shape = 'u32[]', space=smem, size = 0x4, offset = 0x4, fixed_abs, tag = 'smem constant byte address 0x4 - core index']
  #allocation1 [shape = 'u32[144,128]{1,0:T(1,128)}', space=vmem, size = 0x12000, scoped, tag = 'internal scratch']
  %s0 = inlined_call_operand.hbm [shape: f32[64,128], index: 0, kind: input, shape index: {}]
  %s1 = inlined_call_operand.hbm [shape: f32[1,8,128,256], index: 1, kind: input, shape index: {}]
  %s2 = inlined_call_operand.hbm [shape: f32[1,8,256], index: 2, kind: input, shape index: {}]
  %s3 = inlined_call_operand.hbm [shape: f32[1,1,16,128], index: 3, kind: input, shape index: {}]
  %s4 = inlined_call_operand.vmem [shape: f32[1,1,128], index: 4, kind: input, shape index: {}]
  %s5 = inlined_call_operand.hbm [shape: f32[64,128], index: 5, kind: output, shape index: {}]
  %s6 = sld [smem:[#allocation0]]
  $region69: #{tpu_custom_call.1} parent=0
    _
  %s8 = ssub.s32 1, %s6
  %s9 = scalar_select 0, %s8, %s6
  $region1: #{tpu_custom_call.1} parent=0
    #allocation2 [shape = 'u8[32768]{0}', space=vmem, size = 0x8000, scoped, tag = 'input window, operand 0']
    #allocation3 [shape = 's32[2]{0}', space=sflag, size = 0x8, scoped, tag = 'scoped memory for tpu_custom_call.1']
    #allocation4 [shape = 's32[2]{0}', space=sflag, size = 0x8, scoped, tag = 'scoped memory for tpu_custom_call.1']
    #allocation5 [shape = 'u8[1048576]{0}', space=vmem, size = 0x100000, scoped, tag = 'input window, operand 1, single buffered']
    #allocation6 [shape = 's32[1]{0}', space=sflag, size = 0x4, scoped, tag = 'scoped memory for tpu_custom_call.1']
    #allocation7 [shape = 'u8[8192]{0}', space=vmem, size = 0x2000, scoped, tag = 'input window, operand 2, single buffered']
    #allocation8 [shape = 'u8[8192]{0}', space=vmem, size = 0x2000, scoped, tag = 'input window, operand 3, single buffered']
    #allocation9 [shape = 's32[1]{0}', space=sflag, size = 0x4, scoped, tag = 'scoped memory for tpu_custom_call.1']
    #allocation10 [shape = 'u8[32768]{0}', space=vmem, size = 0x8000, scoped, tag = 'output window, operand 0']
    %10 = vsyncpa [#allocation3], 0
    %s11 = scalar_lea.sflag [#allocation3], 1
    %12 = vsyncpa %s11, 0
    %13 = vsyncpa [#allocation6], 0
    %14 = vsyncpa [#allocation9], 0
    %15 = vsyncpa [#allocation4], 0
    %s16 = scalar_lea.sflag [#allocation4], 1
    %17 = vsyncpa %s16, 0
    loop: start=0, step=1, limit=4
    $region2: #{tpu_custom_call.1} parent=1 // loop_pre_header
      _
    $region3: #{tpu_custom_call.1} parent=1 // loop_header
      %s19 = sphi 0, %s23
      %p20 = scmp.ge.s32.totalorder %s19, 4
      %s26 = sphi 0, %s38
      %s27 = sphi 0, %s34
      %s28 = sphi 0, %s26
      %s29 = sphi 0, %s27
      %s30 = sphi 0, %s28
      %s31 = sphi 0, %s29
      %s41 = sphi 0, %s43
      %s44 = sphi 0, %s41
      %s45 = sphi 0, %s44
      %s61 = sphi 0, %s45
      %s67 = sphi 0, %s69
      %s70 = sphi 0, %s67
      %s71 = sphi 0, %s70
      %s87 = sphi 0, %s71
      %s93 = sphi 0, %s95
      %s96 = sphi 0, %s93
      %s97 = sphi 0, %s96
      %s113 = sphi 0, %s97
      %s119 = sphi 0, %s121
      %s122 = sphi 0, %s119
      %s123 = sphi 0, %s122
      %s139 = sphi 0, %s123
      %s145 = sphi 0, %s147
      %s148 = sphi 0, %s145
      %s149 = sphi 0, %s148
      %s165 = sphi 0, %s149
      %s173 = sphi 0, %s175
      %s176 = sphi 0, %s173
      %s177 = sphi 0, %s176
      %s193 = sphi 0, %s177
    $region4: #{tpu_custom_call.1} parent=1 // loop_header_branch
      %22 = sbr.rel (%p20) target = $region8
    $region5: #{tpu_custom_call.1} parent=1 // loop_body
      %s24 = ssub.s32 %s19, 1
      %s25 = ssub.s32 %s19, 2
      %s32 = sadd.s32 1, %s27
      %p33 = scmp.ge.s32.totalorder %s32, 2
      %s34 = scalar_select %p33, 0, %s32
      %s35 = sadd.s32 1, %s26
      %s36 = scalar_select %p33, %s35, %s26
      %p37 = scmp.ge.s32.totalorder %s36, 1
      %s38 = scalar_select %p37, 0, %s36
      %s39 = ssub.s32 %s27, %s34
      %p40 = scmp.eq.s32.totalorder %s39, 0
      %s42 = sadd.s32 %s41, 1
      %s43 = scalar_select %p40, %s41, %s42
      %p46 = pneg %p40
      %p47 = scmp.eq.s32.totalorder %s19, 1
      %p48 = por %p46, %p47
      %p49 = scmp.ne.s32.totalorder %s41, %s44
      %p50 = scmp.eq.s32.totalorder %s19, 0
      %p51 = por %p49, %p50
      %p52 = scmp.ne.s32.totalorder %s41, %s44
      %p53 = scmp.eq.s32.totalorder %s24, 1
      %p54 = por %p52, %p53
      %p55 = scmp.ne.s32.totalorder %s44, %s45
      %p56 = scmp.eq.s32.totalorder %s24, 0
      %p57 = por %p55, %p56
      %p58 = scmp.ne.s32.totalorder %s44, %s45
      %p59 = scmp.eq.s32.totalorder %s25, 1
      %p60 = por %p58, %p59
      %p62 = scmp.ne.s32.totalorder %s45, %s61
      %p63 = scmp.eq.s32.totalorder %s25, 0
      %p64 = por %p62, %p63
      %s65 = ssub.s32 %s26, %s38
      %p66 = scmp.eq.s32.totalorder %s65, 0
      %s68 = sadd.s32 %s67, 1
      %s69 = scalar_select %p66, %s67, %s68
      %p72 = pneg %p66
      %p73 = scmp.eq.s32.totalorder %s19, 1
      %p74 = por %p72, %p73
      %p75 = scmp.ne.s32.totalorder %s67, %s70
      %p76 = scmp.eq.s32.totalorder %s19, 0
      %p77 = por %p75, %p76
      %p78 = scmp.ne.s32.totalorder %s67, %s70
      %p79 = scmp.eq.s32.totalorder %s24, 1
      %p80 = por %p78, %p79
      %p81 = scmp.ne.s32.totalorder %s70, %s71
      %p82 = scmp.eq.s32.totalorder %s24, 0
      %p83 = por %p81, %p82
      %p84 = scmp.ne.s32.totalorder %s70, %s71
      %p85 = scmp.eq.s32.totalorder %s25, 1
      %p86 = por %p84, %p85
      %p88 = scmp.ne.s32.totalorder %s71, %s87
      %p89 = scmp.eq.s32.totalorder %s25, 0
      %p90 = por %p88, %p89
      %s91 = ssub.s32 %s26, %s38
      %p92 = scmp.eq.s32.totalorder %s91, 0
      %s94 = sadd.s32 %s93, 1
      %s95 = scalar_select %p92, %s93, %s94
      %p98 = pneg %p92
      %p99 = scmp.eq.s32.totalorder %s19, 1
      %p100 = por %p98, %p99
      %p101 = scmp.ne.s32.totalorder %s93, %s96
      %p102 = scmp.eq.s32.totalorder %s19, 0
      %p103 = por %p101, %p102
      %p104 = scmp.ne.s32.totalorder %s93, %s96
      %p105 = scmp.eq.s32.totalorder %s24, 1
      %p106 = por %p104, %p105
      %p107 = scmp.ne.s32.totalorder %s96, %s97
      %p108 = scmp.eq.s32.totalorder %s24, 0
      %p109 = por %p107, %p108
      %p110 = scmp.ne.s32.totalorder %s96, %s97
      %p111 = scmp.eq.s32.totalorder %s25, 1
      %p112 = por %p110, %p111
      %p114 = scmp.ne.s32.totalorder %s97, %s113
      %p115 = scmp.eq.s32.totalorder %s25, 0
      %p116 = por %p114, %p115
      %s117 = ssub.s32 %s26, %s38
      %p118 = scmp.eq.s32.totalorder %s117, 0
      %s120 = sadd.s32 %s119, 1
      %s121 = scalar_select %p118, %s119, %s120
      %p124 = pneg %p118
      %p125 = scmp.eq.s32.totalorder %s19, 1
      %p126 = por %p124, %p125
      %p127 = scmp.ne.s32.totalorder %s119, %s122
      %p128 = scmp.eq.s32.totalorder %s19, 0
      %p129 = por %p127, %p128
      %p130 = scmp.ne.s32.totalorder %s119, %s122
      %p131 = scmp.eq.s32.totalorder %s24, 1
      %p132 = por %p130, %p131
      %p133 = scmp.ne.s32.totalorder %s122, %s123
      %p134 = scmp.eq.s32.totalorder %s24, 0
      %p135 = por %p133, %p134
      %p136 = scmp.ne.s32.totalorder %s122, %s123
      %p137 = scmp.eq.s32.totalorder %s25, 1
      %p138 = por %p136, %p137
      %p140 = scmp.ne.s32.totalorder %s123, %s139
      %p141 = scmp.eq.s32.totalorder %s25, 0
      %p142 = por %p140, %p141
      %s143 = ssub.s32 %s26, %s38
      %p144 = scmp.eq.s32.totalorder %s143, 0
      %s146 = sadd.s32 %s145, 1
      %s147 = scalar_select %p144, %s145, %s146
      %p150 = pneg %p144
      %p151 = scmp.eq.s32.totalorder %s19, 1
      %p152 = por %p150, %p151
      %p153 = scmp.ne.s32.totalorder %s145, %s148
      %p154 = scmp.eq.s32.totalorder %s19, 0
      %p155 = por %p153, %p154
      %p156 = scmp.ne.s32.totalorder %s145, %s148
      %p157 = scmp.eq.s32.totalorder %s24, 1
      %p158 = por %p156, %p157
      %p159 = scmp.ne.s32.totalorder %s148, %s149
      %p160 = scmp.eq.s32.totalorder %s24, 0
      %p161 = por %p159, %p160
      %p162 = scmp.ne.s32.totalorder %s148, %s149
      %p163 = scmp.eq.s32.totalorder %s25, 1
      %p164 = por %p162, %p163
      %p166 = scmp.ne.s32.totalorder %s149, %s165
      %p167 = scmp.eq.s32.totalorder %s25, 0
      %p168 = por %p166, %p167
      %s169 = ssub.s32 %s27, %s34
      %s170 = ssub.s32 %s26, %s38
      %s171 = sor.u32 %s169, %s170
      %p172 = scmp.eq.s32.totalorder %s171, 0
      %s174 = sadd.s32 %s173, 1
      %s175 = scalar_select %p172, %s173, %s174
      %p178 = pneg %p172
      %p179 = scmp.eq.s32.totalorder %s19, 1
      %p180 = por %p178, %p179
      %p181 = scmp.ne.s32.totalorder %s173, %s176
      %p182 = scmp.eq.s32.totalorder %s19, 0
      %p183 = por %p181, %p182
      %p184 = scmp.ne.s32.totalorder %s173, %s176
      %p185 = scmp.eq.s32.totalorder %s24, 1
      %p186 = por %p184, %p185
      %p187 = scmp.ne.s32.totalorder %s176, %s177
      %p188 = scmp.eq.s32.totalorder %s24, 0
      %p189 = por %p187, %p188
      %p190 = scmp.ne.s32.totalorder %s176, %s177
      %p191 = scmp.eq.s32.totalorder %s25, 1
      %p192 = por %p190, %p191
      %p194 = scmp.ne.s32.totalorder %s177, %s193
      %p195 = scmp.eq.s32.totalorder %s25, 0
      %p196 = por %p194, %p195
      %p197 = scmp.le.s32.totalorder 1, %s19
      %p198 = scmp.lt.s32.totalorder %s19, 3
      %p199 = pnand %p197, %p198
      %p200 = pneg %p199
      // Predicated region
      $region9: #{tpu_custom_call.1} parent=5 // pred_check
        _
      $region10: #{tpu_custom_call.1} parent=5 // pred_check_branch
        %202 = sbr.rel (%p199) target = $region12
      $region11: #{tpu_custom_call.1} parent=5 // pred_region
        %s203 = ssub.s32 %s19, 1
        // Predicated region
        $region13: #{tpu_custom_call.1} parent=11 // pred_check
          %p204 = pneg %p83
        $region14: #{tpu_custom_call.1} parent=11 // pred_check_branch
          %206 = sbr.rel (%p204) target = $region16
        $region15: #{tpu_custom_call.1} parent=11 // pred_region
          %s208 = ssub.s32 32768, 32768
          %209 = vsyncadd [#allocation6], %s208
          %s210 = smul.addr %s28, 256
          %s211 = smul.addr %s210, 128
          %s212 = scalar_lea.hbm %s1, %s211
          %s213 = sshll.u32 [#allocation5], 4
          %s214 = int_to_ptr.vmem [resolvable:$true] %s213
          %219 = dma.hbm_to_vmem [thread:$0]  %s212, 32768, %s214, [#allocation6], 256, 256, 16
        $region16: #{tpu_custom_call.1} parent=11 // pred_fallthru
          _
        // Predicated region
        $region17: #{tpu_custom_call.1} parent=11 // pred_check
          %p220 = pneg %p109
        $region18: #{tpu_custom_call.1} parent=11 // pred_check_branch
          %222 = sbr.rel (%p220) target = $region20
        $region19: #{tpu_custom_call.1} parent=11 // pred_region
          %s224 = ssub.s32 256, 256
          %225 = vsyncadd [#allocation6], %s224
          %s226 = smul.addr %s28, 2
          %s227 = smul.addr %s226, 128
          %s228 = scalar_lea.hbm %s2, %s227
          %s230 = sshll.u32 [#allocation7], 4
          %s231 = int_to_ptr.vmem [resolvable:$true] %s230
          %233 = dma.hbm_to_vmem [thread:$0]  %s228, 256, %s231, [#allocation6]
        $region20: #{tpu_custom_call.1} parent=11 // pred_fallthru
          _
        // Predicated region
        $region21: #{tpu_custom_call.1} parent=11 // pred_check
          %p234 = pneg %p135
        $region22: #{tpu_custom_call.1} parent=11 // pred_check_branch
          %236 = sbr.rel (%p234) target = $region24
        $region23: #{tpu_custom_call.1} parent=11 // pred_region
          %s238 = ssub.s32 256, 256
          %239 = vsyncadd [#allocation9], %s238
          %s240 = smul.addr %s28, 2
          %s241 = smul.addr %s240, 128
          %s242 = scalar_lea.hbm %s3, %s241
          %s243 = sshll.u32 [#allocation8], 4
          %s244 = int_to_ptr.vmem [resolvable:$true] %s243
          %249 = dma.hbm_to_vmem [thread:$0]  %s242, 256, %s244, [#allocation9], 128, 128, 8
        $region24: #{tpu_custom_call.1} parent=11 // pred_fallthru
          _
        // Predicated region
        $region25: #{tpu_custom_call.1} parent=11 // pred_check
          %p250 = pneg %p161
        $region26: #{tpu_custom_call.1} parent=11 // pred_check_branch
          %252 = sbr.rel (%p250) target = $region28
        $region27: #{tpu_custom_call.1} parent=11 // pred_region
          %p253 = scmp.lt.s32.totalorder %s28, 0
          %s254 = scalar_select %p253, %s28, 0
          %s255 = scalar_lea.vmem %s4, %s254
        $region28: #{tpu_custom_call.1} parent=11 // pred_fallthru
          _
      $region12: #{tpu_custom_call.1} parent=5 // pred_fallthru
        _
      %p256 = scmp.lt.s32.totalorder %s19, 2
      // Predicated region
      $region29: #{tpu_custom_call.1} parent=5 // pred_check
        %p257 = pneg %p256
      $region30: #{tpu_custom_call.1} parent=5 // pred_check_branch
        %259 = sbr.rel (%p257) target = $region32
      $region31: #{tpu_custom_call.1} parent=5 // pred_region
        // Predicated region
        $region33: #{tpu_custom_call.1} parent=31 // pred_check
          %p260 = pneg %p51
        $region34: #{tpu_custom_call.1} parent=31 // pred_check_branch
          %262 = sbr.rel (%p260) target = $region36
        $region35: #{tpu_custom_call.1} parent=31 // pred_region
          %s263 = sand.u32 %s41, 1
          %s264 = scalar_lea.sflag [#allocation3], %s263
          %s265 = sand.u32 %s41, 1
          %s266 = smul.addr %s265, 32
          %s267 = scalar_lea.vmem [#allocation2], %s266
          %s268 = smul.u32 4, %s27
          %s270 = ssub.s32 512, 512
          %271 = vsyncadd %s264, %s270
          %s272 = smul.addr %s268, 128
          %s273 = scalar_lea.hbm %s0, %s272
          %s274 = sshll.u32 %s267, 4
          %s275 = int_to_ptr.vmem [resolvable:$true] %s274
          %280 = dma.hbm_to_vmem [thread:$0]  %s273, 512, %s275, %s264, 128, 128, 8
        $region36: #{tpu_custom_call.1} parent=31 // pred_fallthru
          _
      $region32: #{tpu_custom_call.1} parent=5 // pred_fallthru
        _
      %p281 = scmp.le.s32.totalorder 1, %s19
      %p282 = scmp.lt.s32.totalorder %s19, 3
      %p283 = pnand %p281, %p282
      %p284 = pneg %p283
      // Predicated region
      $region37: #{tpu_custom_call.1} parent=5 // pred_check
        _
      $region38: #{tpu_custom_call.1} parent=5 // pred_check_branch
        %286 = sbr.rel (%p283) target = $region40
      $region39: #{tpu_custom_call.1} parent=5 // pred_region
        %s287 = ssub.s32 %s19, 1
        %s288 = sand.u32 %s44, 1
        %s289 = scalar_lea.sflag [#allocation3], %s288
        %s290 = sand.u32 %s44, 1
        %s291 = smul.addr %s290, 32
        %s292 = scalar_lea.vmem [#allocation2], %s291
        // Predicated region
        $region41: #{tpu_custom_call.1} parent=39 // pred_check
          %p293 = pneg %p57
        $region42: #{tpu_custom_call.1} parent=39 // pred_check_branch
          %295 = sbr.rel (%p293) target = $region44
        $region43: #{tpu_custom_call.1} parent=39 // pred_region
          %296 = dma.done %s289, 512
        $region44: #{tpu_custom_call.1} parent=39 // pred_fallthru
          _
        // Predicated region
        $region45: #{tpu_custom_call.1} parent=39 // pred_check
          %p297 = pneg %p83
        $region46: #{tpu_custom_call.1} parent=39 // pred_check_branch
          %299 = sbr.rel (%p297) target = $region48
        $region47: #{tpu_custom_call.1} parent=39 // pred_region
          %300 = dma.done [#allocation6], 32768
        $region48: #{tpu_custom_call.1} parent=39 // pred_fallthru
          _
        // Predicated region
        $region49: #{tpu_custom_call.1} parent=39 // pred_check
          %p301 = pneg %p109
        $region50: #{tpu_custom_call.1} parent=39 // pred_check_branch
          %303 = sbr.rel (%p301) target = $region52
        $region51: #{tpu_custom_call.1} parent=39 // pred_region
          %304 = dma.done [#allocation6], 256
        $region52: #{tpu_custom_call.1} parent=39 // pred_fallthru
          _
        // Predicated region
        $region53: #{tpu_custom_call.1} parent=39 // pred_check
          %p305 = pneg %p135
        $region54: #{tpu_custom_call.1} parent=39 // pred_check_branch
          %307 = sbr.rel (%p305) target = $region56
        $region55: #{tpu_custom_call.1} parent=39 // pred_region
          %308 = dma.done [#allocation9], 256
        $region56: #{tpu_custom_call.1} parent=39 // pred_fallthru
          _
        %s309 = sand.u32 %s44, 1
        %s310 = scalar_lea.sflag [#allocation3], %s309
        %s311 = sand.u32 %s44, 1
        %s312 = smul.addr %s311, 32
        %s313 = scalar_lea.vmem [#allocation2], %s312
        %p314 = pneg %p57
        %p315 = pneg %p54
        %p316 = pneg %p83
        %p317 = pneg %p80
        %p318 = pneg %p109
        %p319 = pneg %p106
        %p320 = pneg %p135
        %p321 = pneg %p132
        %p322 = scmp.lt.s32.totalorder %s28, 0
        %s323 = scalar_select %p322, %s28, 0
        %s324 = scalar_lea.vmem %s4, %s323
        %p325 = pneg %p161
        %p326 = pneg %p158
        %p327 = pneg %p189
        %p328 = pneg %p186
        %s329 = sand.u32 %s176, 1
        %s330 = scalar_lea.sflag [#allocation4], %s329
        %s331 = sand.u32 %s176, 1
        %s332 = smul.addr %s331, 32
        %s333 = scalar_lea.vmem [#allocation10], %s332
        %s334 = smul.u32 4, %s29
        %p335 = scmp.lt.s32.totalorder %s28, 0
        %s336 = scalar_select %p335, %s28, 0
        %s337 = scalar_lea.vmem %s4, %s336
        %s338 = smul.u32 4, %s29
        %v339 = vld [vmem:[%s292] sm:$0xff]
        %v340 = vld [vmem:[%s292 + $0x8] sm:$0xff]
        %v341 = vld [vmem:[%s292 + $0x10] sm:$0xff]
        %v342 = vld [vmem:[%s292 + $0x18] sm:$0xff]
        %v343 = vld [vmem:[#allocation7] sm:$0xff]
        %v344 = vld [vmem:[#allocation7 + $0x8] sm:$0xff]
        %v345 = vld [vmem:[#allocation8] sm:$0xff]
        %v346 = vld [vmem:[#allocation8 + $0x8] sm:$0xff]
        %v347 = vld [vmem:[%s337] sm:$0x1]
        %v348 = vld [vmem:[#allocation5] sm:$0xff]
        %v349 = vld [vmem:[#allocation5 + $0x8] sm:$0xff]
        %v350 = vld [vmem:[#allocation5 + $0x10] sm:$0xff]
        %v351 = vld [vmem:[#allocation5 + $0x18] sm:$0xff]
        %v352 = vld [vmem:[#allocation5 + $0x20] sm:$0xff]
        %v353 = vld [vmem:[#allocation5 + $0x28] sm:$0xff]
        %v354 = vld [vmem:[#allocation5 + $0x30] sm:$0xff]
        %v355 = vld [vmem:[#allocation5 + $0x38] sm:$0xff]
        %v356 = vld [vmem:[#allocation5 + $0x40] sm:$0xff]
        %v357 = vld [vmem:[#allocation5 + $0x48] sm:$0xff]
        %v358 = vld [vmem:[#allocation5 + $0x50] sm:$0xff]
        %v359 = vld [vmem:[#allocation5 + $0x58] sm:$0xff]
        %v360 = vld [vmem:[#allocation5 + $0x60] sm:$0xff]
        %v361 = vld [vmem:[#allocation5 + $0x68] sm:$0xff]
        %v362 = vld [vmem:[#allocation5 + $0x70] sm:$0xff]
        %v363 = vld [vmem:[#allocation5 + $0x78] sm:$0xff]
        %v364 = vld [vmem:[#allocation5 + $0x80] sm:$0xff]
        %v365 = vld [vmem:[#allocation5 + $0x88] sm:$0xff]
        %v366 = vld [vmem:[#allocation5 + $0x90] sm:$0xff]
        %v367 = vld [vmem:[#allocation5 + $0x98] sm:$0xff]
        %v368 = vld [vmem:[#allocation5 + $0xa0] sm:$0xff]
        %v369 = vld [vmem:[#allocation5 + $0xa8] sm:$0xff]
        %v370 = vld [vmem:[#allocation5 + $0xb0] sm:$0xff]
        %v371 = vld [vmem:[#allocation5 + $0xb8] sm:$0xff]
        %v372 = vld [vmem:[#allocation5 + $0xc0] sm:$0xff]
        %v373 = vld [vmem:[#allocation5 + $0xc8] sm:$0xff]
        %v374 = vld [vmem:[#allocation5 + $0xd0] sm:$0xff]
        %v375 = vld [vmem:[#allocation5 + $0xd8] sm:$0xff]
        %v376 = vld [vmem:[#allocation5 + $0xe0] sm:$0xff]
        %v377 = vld [vmem:[#allocation5 + $0xe8] sm:$0xff]
        %v378 = vld [vmem:[#allocation5 + $0xf0] sm:$0xff]
        %v379 = vld [vmem:[#allocation5 + $0xf8] sm:$0xff]
        %v380 = vlaneseq
        %v381 = vshrl.u32 %v380, 7
        %v382 = vsub.s32 0, %v381
        %v383 = vrot.slane %v343, %v382
        %v384 = vlaneseq
        %v385 = vshrl.u32 %v384, 7
        %v386 = vsub.s32 0, %v385
        %v387 = vrot.slane %v344, %v386
        %388 = vmatprep.subr.mxu0 %v379
        %389 = vmatpush1.msra.mxu0 %v378
        %390 = vmatprep.subr.mxu0 %v377
        %391 = vmatpush1.msra.mxu0 %v376
        %392 = vmatprep.subr.mxu0 %v375
        %393 = vmatpush1.msra.mxu0 %v374
        %394 = vmatprep.subr.mxu0 %v373
        %395 = vmatpush1.msra.mxu0 %v372
        %396 = vmatprep.subr.mxu0 %v371
        %397 = vmatpush1.msra.mxu0 %v370
        %398 = vmatprep.subr.mxu0 %v369
        %399 = vmatpush1.msra.mxu0 %v368
        %400 = vmatprep.subr.mxu0 %v367
        %401 = vmatpush1.msra.mxu0 %v366
        %402 = vmatprep.subr.mxu0 %v365
        %403 = vmatpush1.msra.mxu0 %v364
        %404 = vmatprep.subr.mxu0 %v363
        %405 = vmatpush1.msra.mxu0 %v362
        %406 = vmatprep.subr.mxu0 %v361
        %407 = vmatpush1.msra.mxu0 %v360
        %408 = vmatprep.subr.mxu0 %v359
        %409 = vmatpush1.msra.mxu0 %v358
        %410 = vmatprep.subr.mxu0 %v357
        %411 = vmatpush1.msra.mxu0 %v356
        %412 = vmatprep.subr.mxu0 %v355
        %413 = vmatpush1.msra.mxu0 %v354
        %414 = vmatprep.subr.mxu0 %v353
        %415 = vmatpush1.msra.mxu0 %v352
        %416 = vmatprep.subr.mxu0 %v351
        %417 = vmatpush1.msra.mxu0 %v350
        %418 = vmatprep.subr.mxu0 %v349
        %419 = vmatpush1.msra.mxu0 %v348
        %420 = vmatprep.subr.mxu0 0.0
        %421 = vmatpush2.msra.mxu0 0.0
        %422 = vmatprep.subr.mxu0 0.0
        %423 = vmatpush2.msra.mxu0 0.0
        %424 = vmatprep.subr.mxu0 0.0
        %425 = vmatpush2.msra.mxu0 0.0
        %426 = vmatprep.subr.mxu0 0.0
        %427 = vmatpush2.msra.mxu0 0.0
        %428 = vmatprep.subr.mxu0 0.0
        %429 = vmatpush2.msra.mxu0 0.0
        %430 = vmatprep.subr.mxu0 0.0
        %431 = vmatpush2.msra.mxu0 0.0
        %432 = vmatprep.subr.mxu0 0.0
        %433 = vmatpush2.msra.mxu0 0.0
        %434 = vmatprep.subr.mxu0 0.0
        %435 = vmatpush2.msra.mxu0 0.0
        %436 = vmatprep.subr.mxu0 0.0
        %437 = vmatpush2.msra.mxu0 0.0
        %438 = vmatprep.subr.mxu0 0.0
        %439 = vmatpush2.msra.mxu0 0.0
        %440 = vmatprep.subr.mxu0 0.0
        %441 = vmatpush2.msra.mxu0 0.0
        %442 = vmatprep.subr.mxu0 0.0
        %443 = vmatpush2.msra.mxu0 0.0
        %444 = vmatprep.subr.mxu0 0.0
        %445 = vmatpush2.msra.mxu0 0.0
        %446 = vmatprep.subr.mxu0 0.0
        %447 = vmatpush2.msra.mxu0 0.0
        %448 = vmatprep.subr.mxu0 0.0
        %449 = vmatpush2.msra.mxu0 0.0
        %450 = vmatprep.subr.mxu0 0.0
        %451 = vmatpush2.msra.mxu0 0.0
        %452 = vmatprep.mubr.f32.mxu0 0.0
        %453 = vmatmul.mubr.f32.gmra.mxu0 %v339
        %v454 = vpop.f32.mrf.mxu0
        %v455 = vadd.f32 %v383, %v454
        %v456 = vpop.f32.mrf.mxu0
        %v457 = vadd.f32 %v387, %v456
        %458 = vmatprep.mubr.f32.mxu0 0.0
        %459 = vmatmul.mubr.f32.gmra.mxu0 %v340
        %v460 = vpop.f32.mrf.mxu0
        %v461 = vadd.f32 %v383, %v460
        %v462 = vpop.f32.mrf.mxu0
        %v463 = vadd.f32 %v387, %v462
        %464 = vmatprep.mubr.f32.mxu0 0.0
        %465 = vmatmul.mubr.f32.gmra.mxu0 %v341
        %v466 = vpop.f32.mrf.mxu0
        %v467 = vadd.f32 %v383, %v466
        %v468 = vpop.f32.mrf.mxu0
        %v469 = vadd.f32 %v387, %v468
        %470 = vmatprep.mubr.f32.mxu0 0.0
        %471 = vmatmul.mubr.f32.gmra.mxu0 %v342
        %v472 = vpop.f32.mrf.mxu0
        %v473 = vadd.f32 %v383, %v472
        %v474 = vpop.f32.mrf.mxu0
        %v475 = vadd.f32 %v387, %v474
        %476 = vdwg.mxu0
        %v477 = vxor.u32 %v455, 2147483648
        %v478 = vxor.u32 %v457, 2147483648
        %v479 = vxor.u32 %v461, 2147483648
        %v480 = vxor.u32 %v463, 2147483648
        %v481 = vxor.u32 %v467, 2147483648
        %v482 = vxor.u32 %v469, 2147483648
        %v483 = vxor.u32 %v473, 2147483648
        %v484 = vxor.u32 %v475, 2147483648
        %v485 = vmul.f32 %v477, 1.442695
        %v486 = vpow.pop %v485
        %v487 = vmul.f32 %v478, 1.442695
        %v488 = vpow.pop %v487
        %v489 = vmul.f32 %v479, 1.442695
        %v490 = vpow.pop %v489
        %v491 = vmul.f32 %v480, 1.442695
        %v492 = vpow.pop %v491
        %v493 = vmul.f32 %v481, 1.442695
        %v494 = vpow.pop %v493
        %v495 = vmul.f32 %v482, 1.442695
        %v496 = vpow.pop %v495
        %v497 = vmul.f32 %v483, 1.442695
        %v498 = vpow.pop %v497
        %v499 = vmul.f32 %v484, 1.442695
        %v500 = vpow.pop %v499
        %v501 = vadd.f32 %v486, 1.0
        %v502 = vadd.f32 %v488, 1.0
        %v503 = vadd.f32 %v490, 1.0
        %v504 = vadd.f32 %v492, 1.0
        %v505 = vadd.f32 %v494, 1.0
        %v506 = vadd.f32 %v496, 1.0
        %v507 = vadd.f32 %v498, 1.0
        %v508 = vadd.f32 %v500, 1.0
        %v509 = vrcp.pop %v501
        %v510 = vmul.f32 1.0, %v509
        %v511 = vrcp.pop %v502
        %v512 = vmul.f32 1.0, %v511
        %v513 = vrcp.pop %v503
        %v514 = vmul.f32 1.0, %v513
        %v515 = vrcp.pop %v504
        %v516 = vmul.f32 1.0, %v515
        %v517 = vrcp.pop %v505
        %v518 = vmul.f32 1.0, %v517
        %v519 = vrcp.pop %v506
        %v520 = vmul.f32 1.0, %v519
        %v521 = vrcp.pop %v507
        %v522 = vmul.f32 1.0, %v521
        %v523 = vrcp.pop %v508
        %v524 = vmul.f32 1.0, %v523
        %v525 = vlaneseq
        %v526 = vshrl.u32 %v525, 7
        %v527 = vsub.s32 0, %v526
        %v528 = vrot.slane %v345, %v527
        %v529 = vmul.f32 %v510, %v528
        %v530 = vmul.f32 %v514, %v528
        %v531 = vmul.f32 %v518, %v528
        %v532 = vmul.f32 %v522, %v528
        %v533 = vlaneseq
        %v534 = vshrl.u32 %v533, 7
        %v535 = vsub.s32 1, %v534
        %v536 = vrot.slane %v345, %v535
        %v537 = vmul.f32 %v512, %v536
        %v538 = vmul.f32 %v516, %v536
        %v539 = vmul.f32 %v520, %v536
        %v540 = vmul.f32 %v524, %v536
        %v541 = vadd.f32 %v529, %v537
        %v542 = vadd.f32 %v530, %v538
        %v543 = vadd.f32 %v531, %v539
        %v544 = vadd.f32 %v532, %v540
        %s545 = scalar_lea.vmem [#allocation5], 256
        %v546 = vld [vmem:[%s545] sm:$0xff]
        %v547 = vld [vmem:[%s545 + $0x8] sm:$0xff]
        %v548 = vld [vmem:[%s545 + $0x10] sm:$0xff]
        %v549 = vld [vmem:[%s545 + $0x18] sm:$0xff]
        %v550 = vld [vmem:[%s545 + $0x20] sm:$0xff]
        %v551 = vld [vmem:[%s545 + $0x28] sm:$0xff]
        %v552 = vld [vmem:[%s545 + $0x30] sm:$0xff]
        %v553 = vld [vmem:[%s545 + $0x38] sm:$0xff]
        %v554 = vld [vmem:[%s545 + $0x40] sm:$0xff]
        %v555 = vld [vmem:[%s545 + $0x48] sm:$0xff]
        %v556 = vld [vmem:[%s545 + $0x50] sm:$0xff]
        %v557 = vld [vmem:[%s545 + $0x58] sm:$0xff]
        %v558 = vld [vmem:[%s545 + $0x60] sm:$0xff]
        %v559 = vld [vmem:[%s545 + $0x68] sm:$0xff]
        %v560 = vld [vmem:[%s545 + $0x70] sm:$0xff]
        %v561 = vld [vmem:[%s545 + $0x78] sm:$0xff]
        %v562 = vld [vmem:[%s545 + $0x80] sm:$0xff]
        %v563 = vld [vmem:[%s545 + $0x88] sm:$0xff]
        %v564 = vld [vmem:[%s545 + $0x90] sm:$0xff]
        %v565 = vld [vmem:[%s545 + $0x98] sm:$0xff]
        %v566 = vld [vmem:[%s545 + $0xa0] sm:$0xff]
        %v567 = vld [vmem:[%s545 + $0xa8] sm:$0xff]
        %v568 = vld [vmem:[%s545 + $0xb0] sm:$0xff]
        %v569 = vld [vmem:[%s545 + $0xb8] sm:$0xff]
        %v570 = vld [vmem:[%s545 + $0xc0] sm:$0xff]
        %v571 = vld [vmem:[%s545 + $0xc8] sm:$0xff]
        %v572 = vld [vmem:[%s545 + $0xd0] sm:$0xff]
        %v573 = vld [vmem:[%s545 + $0xd8] sm:$0xff]
        %v574 = vld [vmem:[%s545 + $0xe0] sm:$0xff]
        %v575 = vld [vmem:[%s545 + $0xe8] sm:$0xff]
        %v576 = vld [vmem:[%s545 + $0xf0] sm:$0xff]
        %v577 = vld [vmem:[%s545 + $0xf8] sm:$0xff]
        %v578 = vlaneseq
        %v579 = vshrl.u32 %v578, 7
        %v580 = vsub.s32 1, %v579
        %v581 = vrot.slane %v343, %v580
        %v582 = vlaneseq
        %v583 = vshrl.u32 %v582, 7
        %v584 = vsub.s32 1, %v583
        %v585 = vrot.slane %v344, %v584
        %586 = vmatprep.subr.mxu0 %v577
        %587 = vmatpush1.msra.mxu0 %v576
        %588 = vmatprep.subr.mxu0 %v575
        %589 = vmatpush1.msra.mxu0 %v574
        %590 = vmatprep.subr.mxu0 %v573
        %591 = vmatpush1.msra.mxu0 %v572
        %592 = vmatprep.subr.mxu0 %v571
        %593 = vmatpush1.msra.mxu0 %v570
        %594 = vmatprep.subr.mxu0 %v569
        %595 = vmatpush1.msra.mxu0 %v568
        %596 = vmatprep.subr.mxu0 %v567
        %597 = vmatpush1.msra.mxu0 %v566
        %598 = vmatprep.subr.mxu0 %v565
        %599 = vmatpush1.msra.mxu0 %v564
        %600 = vmatprep.subr.mxu0 %v563
        %601 = vmatpush1.msra.mxu0 %v562
        %602 = vmatprep.subr.mxu0 %v561
        %603 = vmatpush1.msra.mxu0 %v560
        %604 = vmatprep.subr.mxu0 %v559
        %605 = vmatpush1.msra.mxu0 %v558
        %606 = vmatprep.subr.mxu0 %v557
        %607 = vmatpush1.msra.mxu0 %v556
        %608 = vmatprep.subr.mxu0 %v555
        %609 = vmatpush1.msra.mxu0 %v554
        %610 = vmatprep.subr.mxu0 %v553
        %611 = vmatpush1.msra.mxu0 %v552
        %612 = vmatprep.subr.mxu0 %v551
        %613 = vmatpush1.msra.mxu0 %v550
        %614 = vmatprep.subr.mxu0 %v549
        %615 = vmatpush1.msra.mxu0 %v548
        %616 = vmatprep.subr.mxu0 %v547
        %617 = vmatpush1.msra.mxu0 %v546
        %618 = vmatprep.subr.mxu0 0.0
        %619 = vmatpush2.msra.mxu0 0.0
        %620 = vmatprep.subr.mxu0 0.0
        %621 = vmatpush2.msra.mxu0 0.0
        %622 = vmatprep.subr.mxu0 0.0
        %623 = vmatpush2.msra.mxu0 0.0
        %624 = vmatprep.subr.mxu0 0.0
        %625 = vmatpush2.msra.mxu0 0.0
        %626 = vmatprep.subr.mxu0 0.0
        %627 = vmatpush2.msra.mxu0 0.0
        %628 = vmatprep.subr.mxu0 0.0
        %629 = vmatpush2.msra.mxu0 0.0
        %630 = vmatprep.subr.mxu0 0.0
        %631 = vmatpush2.msra.mxu0 0.0
        %632 = vmatprep.subr.mxu0 0.0
        %633 = vmatpush2.msra.mxu0 0.0
        %634 = vmatprep.subr.mxu0 0.0
        %635 = vmatpush2.msra.mxu0 0.0
        %636 = vmatprep.subr.mxu0 0.0
        %637 = vmatpush2.msra.mxu0 0.0
        %638 = vmatprep.subr.mxu0 0.0
        %639 = vmatpush2.msra.mxu0 0.0
        %640 = vmatprep.subr.mxu0 0.0
        %641 = vmatpush2.msra.mxu0 0.0
        %642 = vmatprep.subr.mxu0 0.0
        %643 = vmatpush2.msra.mxu0 0.0
        %644 = vmatprep.subr.mxu0 0.0
        %645 = vmatpush2.msra.mxu0 0.0
        %646 = vmatprep.subr.mxu0 0.0
        %647 = vmatpush2.msra.mxu0 0.0
        %648 = vmatprep.subr.mxu0 0.0
        %649 = vmatpush2.msra.mxu0 0.0
        %650 = vmatprep.mubr.f32.mxu0 0.0
        %651 = vmatmul.mubr.f32.gmra.mxu0 %v339
        %v652 = vpop.f32.mrf.mxu0
        %v653 = vadd.f32 %v581, %v652
        %v654 = vpop.f32.mrf.mxu0
        %v655 = vadd.f32 %v585, %v654
        %656 = vmatprep.mubr.f32.mxu0 0.0
        %657 = vmatmul.mubr.f32.gmra.mxu0 %v340
        %v658 = vpop.f32.mrf.mxu0
        %v659 = vadd.f32 %v581, %v658
        %v660 = vpop.f32.mrf.mxu0
        %v661 = vadd.f32 %v585, %v660
        %662 = vmatprep.mubr.f32.mxu0 0.0
        %663 = vmatmul.mubr.f32.gmra.mxu0 %v341
        %v664 = vpop.f32.mrf.mxu0
        %v665 = vadd.f32 %v581, %v664
        %v666 = vpop.f32.mrf.mxu0
        %v667 = vadd.f32 %v585, %v666
        %668 = vmatprep.mubr.f32.mxu0 0.0
        %669 = vmatmul.mubr.f32.gmra.mxu0 %v342
        %v670 = vpop.f32.mrf.mxu0
        %v671 = vadd.f32 %v581, %v670
        %v672 = vpop.f32.mrf.mxu0
        %v673 = vadd.f32 %v585, %v672
        %674 = vdwg.mxu0
        %v675 = vxor.u32 %v653, 2147483648
        %v676 = vxor.u32 %v655, 2147483648
        %v677 = vxor.u32 %v659, 2147483648
        %v678 = vxor.u32 %v661, 2147483648
        %v679 = vxor.u32 %v665, 2147483648
        %v680 = vxor.u32 %v667, 2147483648
        %v681 = vxor.u32 %v671, 2147483648
        %v682 = vxor.u32 %v673, 2147483648
        %v683 = vmul.f32 %v675, 1.442695
        %v684 = vpow.pop %v683
        %v685 = vmul.f32 %v676, 1.442695
        %v686 = vpow.pop %v685
        %v687 = vmul.f32 %v677, 1.442695
        %v688 = vpow.pop %v687
        %v689 = vmul.f32 %v678, 1.442695
        %v690 = vpow.pop %v689
        %v691 = vmul.f32 %v679, 1.442695
        %v692 = vpow.pop %v691
        %v693 = vmul.f32 %v680, 1.442695
        %v694 = vpow.pop %v693
        %v695 = vmul.f32 %v681, 1.442695
        %v696 = vpow.pop %v695
        %v697 = vmul.f32 %v682, 1.442695
        %v698 = vpow.pop %v697
        %v699 = vadd.f32 %v684, 1.0
        %v700 = vadd.f32 %v686, 1.0
        %v701 = vadd.f32 %v688, 1.0
        %v702 = vadd.f32 %v690, 1.0
        %v703 = vadd.f32 %v692, 1.0
        %v704 = vadd.f32 %v694, 1.0
        %v705 = vadd.f32 %v696, 1.0
        %v706 = vadd.f32 %v698, 1.0
        %v707 = vrcp.pop %v699
        %v708 = vmul.f32 1.0, %v707
        %v709 = vrcp.pop %v700
        %v710 = vmul.f32 1.0, %v709
        %v711 = vrcp.pop %v701
        %v712 = vmul.f32 1.0, %v711
        %v713 = vrcp.pop %v702
        %v714 = vmul.f32 1.0, %v713
        %v715 = vrcp.pop %v703
        %v716 = vmul.f32 1.0, %v715
        %v717 = vrcp.pop %v704
        %v718 = vmul.f32 1.0, %v717
        %v719 = vrcp.pop %v705
        %v720 = vmul.f32 1.0, %v719
        %v721 = vrcp.pop %v706
        %v722 = vmul.f32 1.0, %v721
        %v723 = vlaneseq
        %v724 = vshrl.u32 %v723, 7
        %v725 = vsub.s32 2, %v724
        %v726 = vrot.slane %v345, %v725
        %v727 = vmul.f32 %v708, %v726
        %v728 = vmul.f32 %v712, %v726
        %v729 = vmul.f32 %v716, %v726
        %v730 = vmul.f32 %v720, %v726
        %v731 = vadd.f32 %v541, %v727
        %v732 = vadd.f32 %v542, %v728
        %v733 = vadd.f32 %v543, %v729
        %v734 = vadd.f32 %v544, %v730
        %v735 = vlaneseq
        %v736 = vshrl.u32 %v735, 7
        %v737 = vsub.s32 3, %v736
        %v738 = vrot.slane %v345, %v737
        %v739 = vmul.f32 %v710, %v738
        %v740 = vmul.f32 %v714, %v738
        %v741 = vmul.f32 %v718, %v738
        %v742 = vmul.f32 %v722, %v738
        %v743 = vadd.f32 %v731, %v739
        %v744 = vadd.f32 %v732, %v740
        %v745 = vadd.f32 %v733, %v741
        %v746 = vadd.f32 %v734, %v742
        %s747 = scalar_lea.vmem [#allocation5], 512
        %v748 = vld [vmem:[%s747] sm:$0xff]
        %v749 = vld [vmem:[%s747 + $0x8] sm:$0xff]
        %v750 = vld [vmem:[%s747 + $0x10] sm:$0xff]
        %v751 = vld [vmem:[%s747 + $0x18] sm:$0xff]
        %v752 = vld [vmem:[%s747 + $0x20] sm:$0xff]
        %v753 = vld [vmem:[%s747 + $0x28] sm:$0xff]
        %v754 = vld [vmem:[%s747 + $0x30] sm:$0xff]
        %v755 = vld [vmem:[%s747 + $0x38] sm:$0xff]
        %v756 = vld [vmem:[%s747 + $0x40] sm:$0xff]
        %v757 = vld [vmem:[%s747 + $0x48] sm:$0xff]
        %v758 = vld [vmem:[%s747 + $0x50] sm:$0xff]
        %v759 = vld [vmem:[%s747 + $0x58] sm:$0xff]
        %v760 = vld [vmem:[%s747 + $0x60] sm:$0xff]
        %v761 = vld [vmem:[%s747 + $0x68] sm:$0xff]
        %v762 = vld [vmem:[%s747 + $0x70] sm:$0xff]
        %v763 = vld [vmem:[%s747 + $0x78] sm:$0xff]
        %v764 = vld [vmem:[%s747 + $0x80] sm:$0xff]
        %v765 = vld [vmem:[%s747 + $0x88] sm:$0xff]
        %v766 = vld [vmem:[%s747 + $0x90] sm:$0xff]
        %v767 = vld [vmem:[%s747 + $0x98] sm:$0xff]
        %v768 = vld [vmem:[%s747 + $0xa0] sm:$0xff]
        %v769 = vld [vmem:[%s747 + $0xa8] sm:$0xff]
        %v770 = vld [vmem:[%s747 + $0xb0] sm:$0xff]
        %v771 = vld [vmem:[%s747 + $0xb8] sm:$0xff]
        %v772 = vld [vmem:[%s747 + $0xc0] sm:$0xff]
        %v773 = vld [vmem:[%s747 + $0xc8] sm:$0xff]
        %v774 = vld [vmem:[%s747 + $0xd0] sm:$0xff]
        %v775 = vld [vmem:[%s747 + $0xd8] sm:$0xff]
        %v776 = vld [vmem:[%s747 + $0xe0] sm:$0xff]
        %v777 = vld [vmem:[%s747 + $0xe8] sm:$0xff]
        %v778 = vld [vmem:[%s747 + $0xf0] sm:$0xff]
        %v779 = vld [vmem:[%s747 + $0xf8] sm:$0xff]
        %v780 = vlaneseq
        %v781 = vshrl.u32 %v780, 7
        %v782 = vsub.s32 2, %v781
        %v783 = vrot.slane %v343, %v782
        %v784 = vlaneseq
        %v785 = vshrl.u32 %v784, 7
        %v786 = vsub.s32 2, %v785
        %v787 = vrot.slane %v344, %v786
        %788 = vmatprep.subr.mxu0 %v779
        %789 = vmatpush1.msra.mxu0 %v778
        %790 = vmatprep.subr.mxu0 %v777
        %791 = vmatpush1.msra.mxu0 %v776
        %792 = vmatprep.subr.mxu0 %v775
        %793 = vmatpush1.msra.mxu0 %v774
        %794 = vmatprep.subr.mxu0 %v773
        %795 = vmatpush1.msra.mxu0 %v772
        %796 = vmatprep.subr.mxu0 %v771
        %797 = vmatpush1.msra.mxu0 %v770
        %798 = vmatprep.subr.mxu0 %v769
        %799 = vmatpush1.msra.mxu0 %v768
        %800 = vmatprep.subr.mxu0 %v767
        %801 = vmatpush1.msra.mxu0 %v766
        %802 = vmatprep.subr.mxu0 %v765
        %803 = vmatpush1.msra.mxu0 %v764
        %804 = vmatprep.subr.mxu0 %v763
        %805 = vmatpush1.msra.mxu0 %v762
        %806 = vmatprep.subr.mxu0 %v761
        %807 = vmatpush1.msra.mxu0 %v760
        %808 = vmatprep.subr.mxu0 %v759
        %809 = vmatpush1.msra.mxu0 %v758
        %810 = vmatprep.subr.mxu0 %v757
        %811 = vmatpush1.msra.mxu0 %v756
        %812 = vmatprep.subr.mxu0 %v755
        %813 = vmatpush1.msra.mxu0 %v754
        %814 = vmatprep.subr.mxu0 %v753
        %815 = vmatpush1.msra.mxu0 %v752
        %816 = vmatprep.subr.mxu0 %v751
        %817 = vmatpush1.msra.mxu0 %v750
        %818 = vmatprep.subr.mxu0 %v749
        %819 = vmatpush1.msra.mxu0 %v748
        %820 = vmatprep.subr.mxu0 0.0
        %821 = vmatpush2.msra.mxu0 0.0
        %822 = vmatprep.subr.mxu0 0.0
        %823 = vmatpush2.msra.mxu0 0.0
        %824 = vmatprep.subr.mxu0 0.0
        %825 = vmatpush2.msra.mxu0 0.0
        %826 = vmatprep.subr.mxu0 0.0
        %827 = vmatpush2.msra.mxu0 0.0
        %828 = vmatprep.subr.mxu0 0.0
        %829 = vmatpush2.msra.mxu0 0.0
        %830 = vmatprep.subr.mxu0 0.0
        %831 = vmatpush2.msra.mxu0 0.0
        %832 = vmatprep.subr.mxu0 0.0
        %833 = vmatpush2.msra.mxu0 0.0
        %834 = vmatprep.subr.mxu0 0.0
        %835 = vmatpush2.msra.mxu0 0.0
        %836 = vmatprep.subr.mxu0 0.0
        %837 = vmatpush2.msra.mxu0 0.0
        %838 = vmatprep.subr.mxu0 0.0
        %839 = vmatpush2.msra.mxu0 0.0
        %840 = vmatprep.subr.mxu0 0.0
        %841 = vmatpush2.msra.mxu0 0.0
        %842 = vmatprep.subr.mxu0 0.0
        %843 = vmatpush2.msra.mxu0 0.0
        %844 = vmatprep.subr.mxu0 0.0
        %845 = vmatpush2.msra.mxu0 0.0
        %846 = vmatprep.subr.mxu0 0.0
        %847 = vmatpush2.msra.mxu0 0.0
        %848 = vmatprep.subr.mxu0 0.0
        %849 = vmatpush2.msra.mxu0 0.0
        %850 = vmatprep.subr.mxu0 0.0
        %851 = vmatpush2.msra.mxu0 0.0
        %852 = vmatprep.mubr.f32.mxu0 0.0
        %853 = vmatmul.mubr.f32.gmra.mxu0 %v339
        %v854 = vpop.f32.mrf.mxu0
        %v855 = vadd.f32 %v783, %v854
        %v856 = vpop.f32.mrf.mxu0
        %v857 = vadd.f32 %v787, %v856
        %858 = vmatprep.mubr.f32.mxu0 0.0
        %859 = vmatmul.mubr.f32.gmra.mxu0 %v340
        %v860 = vpop.f32.mrf.mxu0
        %v861 = vadd.f32 %v783, %v860
        %v862 = vpop.f32.mrf.mxu0
        %v863 = vadd.f32 %v787, %v862
        %864 = vmatprep.mubr.f32.mxu0 0.0
        %865 = vmatmul.mubr.f32.gmra.mxu0 %v341
        %v866 = vpop.f32.mrf.mxu0
        %v867 = vadd.f32 %v783, %v866
        %v868 = vpop.f32.mrf.mxu0
        %v869 = vadd.f32 %v787, %v868
        %870 = vmatprep.mubr.f32.mxu0 0.0
        %871 = vmatmul.mubr.f32.gmra.mxu0 %v342
        %v872 = vpop.f32.mrf.mxu0
        %v873 = vadd.f32 %v783, %v872
        %v874 = vpop.f32.mrf.mxu0
        %v875 = vadd.f32 %v787, %v874
        %876 = vdwg.mxu0
        %v877 = vxor.u32 %v855, 2147483648
        %v878 = vxor.u32 %v857, 2147483648
        %v879 = vxor.u32 %v861, 2147483648
        %v880 = vxor.u32 %v863, 2147483648
        %v881 = vxor.u32 %v867, 2147483648
        %v882 = vxor.u32 %v869, 2147483648
        %v883 = vxor.u32 %v873, 2147483648
        %v884 = vxor.u32 %v875, 2147483648
        %v885 = vmul.f32 %v877, 1.442695
        %v886 = vpow.pop %v885
        %v887 = vmul.f32 %v878, 1.442695
        %v888 = vpow.pop %v887
        %v889 = vmul.f32 %v879, 1.442695
        %v890 = vpow.pop %v889
        %v891 = vmul.f32 %v880, 1.442695
        %v892 = vpow.pop %v891
        %v893 = vmul.f32 %v881, 1.442695
        %v894 = vpow.pop %v893
        %v895 = vmul.f32 %v882, 1.442695
        %v896 = vpow.pop %v895
        %v897 = vmul.f32 %v883, 1.442695
        %v898 = vpow.pop %v897
        %v899 = vmul.f32 %v884, 1.442695
        %v900 = vpow.pop %v899
        %v901 = vadd.f32 %v886, 1.0
        %v902 = vadd.f32 %v888, 1.0
        %v903 = vadd.f32 %v890, 1.0
        %v904 = vadd.f32 %v892, 1.0
        %v905 = vadd.f32 %v894, 1.0
        %v906 = vadd.f32 %v896, 1.0
        %v907 = vadd.f32 %v898, 1.0
        %v908 = vadd.f32 %v900, 1.0
        %v909 = vrcp.pop %v901
        %v910 = vmul.f32 1.0, %v909
        %v911 = vrcp.pop %v902
        %v912 = vmul.f32 1.0, %v911
        %v913 = vrcp.pop %v903
        %v914 = vmul.f32 1.0, %v913
        %v915 = vrcp.pop %v904
        %v916 = vmul.f32 1.0, %v915
        %v917 = vrcp.pop %v905
        %v918 = vmul.f32 1.0, %v917
        %v919 = vrcp.pop %v906
        %v920 = vmul.f32 1.0, %v919
        %v921 = vrcp.pop %v907
        %v922 = vmul.f32 1.0, %v921
        %v923 = vrcp.pop %v908
        %v924 = vmul.f32 1.0, %v923
        %v925 = vlaneseq
        %v926 = vshrl.u32 %v925, 7
        %v927 = vsub.s32 4, %v926
        %v928 = vrot.slane %v345, %v927
        %v929 = vmul.f32 %v910, %v928
        %v930 = vmul.f32 %v914, %v928
        %v931 = vmul.f32 %v918, %v928
        %v932 = vmul.f32 %v922, %v928
        %v933 = vadd.f32 %v743, %v929
        %v934 = vadd.f32 %v744, %v930
        %v935 = vadd.f32 %v745, %v931
        %v936 = vadd.f32 %v746, %v932
        %v937 = vlaneseq
        %v938 = vshrl.u32 %v937, 7
        %v939 = vsub.s32 5, %v938
        %v940 = vrot.slane %v345, %v939
        %v941 = vmul.f32 %v912, %v940
        %v942 = vmul.f32 %v916, %v940
        %v943 = vmul.f32 %v920, %v940
        %v944 = vmul.f32 %v924, %v940
        %v945 = vadd.f32 %v933, %v941
        %v946 = vadd.f32 %v934, %v942
        %v947 = vadd.f32 %v935, %v943
        %v948 = vadd.f32 %v936, %v944
        %s949 = scalar_lea.vmem [#allocation5], 768
        %v950 = vld [vmem:[%s949] sm:$0xff]
        %v951 = vld [vmem:[%s949 + $0x8] sm:$0xff]
        %v952 = vld [vmem:[%s949 + $0x10] sm:$0xff]
        %v953 = vld [vmem:[%s949 + $0x18] sm:$0xff]
        %v954 = vld [vmem:[%s949 + $0x20] sm:$0xff]
        %v955 = vld [vmem:[%s949 + $0x28] sm:$0xff]
        %v956 = vld [vmem:[%s949 + $0x30] sm:$0xff]
        %v957 = vld [vmem:[%s949 + $0x38] sm:$0xff]
        %v958 = vld [vmem:[%s949 + $0x40] sm:$0xff]
        %v959 = vld [vmem:[%s949 + $0x48] sm:$0xff]
        %v960 = vld [vmem:[%s949 + $0x50] sm:$0xff]
        %v961 = vld [vmem:[%s949 + $0x58] sm:$0xff]
        %v962 = vld [vmem:[%s949 + $0x60] sm:$0xff]
        %v963 = vld [vmem:[%s949 + $0x68] sm:$0xff]
        %v964 = vld [vmem:[%s949 + $0x70] sm:$0xff]
        %v965 = vld [vmem:[%s949 + $0x78] sm:$0xff]
        %v966 = vld [vmem:[%s949 + $0x80] sm:$0xff]
        %v967 = vld [vmem:[%s949 + $0x88] sm:$0xff]
        %v968 = vld [vmem:[%s949 + $0x90] sm:$0xff]
        %v969 = vld [vmem:[%s949 + $0x98] sm:$0xff]
        %v970 = vld [vmem:[%s949 + $0xa0] sm:$0xff]
        %v971 = vld [vmem:[%s949 + $0xa8] sm:$0xff]
        %v972 = vld [vmem:[%s949 + $0xb0] sm:$0xff]
        %v973 = vld [vmem:[%s949 + $0xb8] sm:$0xff]
        %v974 = vld [vmem:[%s949 + $0xc0] sm:$0xff]
        %v975 = vld [vmem:[%s949 + $0xc8] sm:$0xff]
        %v976 = vld [vmem:[%s949 + $0xd0] sm:$0xff]
        %v977 = vld [vmem:[%s949 + $0xd8] sm:$0xff]
        %v978 = vld [vmem:[%s949 + $0xe0] sm:$0xff]
        %v979 = vld [vmem:[%s949 + $0xe8] sm:$0xff]
        %v980 = vld [vmem:[%s949 + $0xf0] sm:$0xff]
        %v981 = vld [vmem:[%s949 + $0xf8] sm:$0xff]
        %v982 = vlaneseq
        %v983 = vshrl.u32 %v982, 7
        %v984 = vsub.s32 3, %v983
        %v985 = vrot.slane %v343, %v984
        %v986 = vlaneseq
        %v987 = vshrl.u32 %v986, 7
        %v988 = vsub.s32 3, %v987
        %v989 = vrot.slane %v344, %v988
        %990 = vmatprep.subr.mxu0 %v981
        %991 = vmatpush1.msra.mxu0 %v980
        %992 = vmatprep.subr.mxu0 %v979
        %993 = vmatpush1.msra.mxu0 %v978
        %994 = vmatprep.subr.mxu0 %v977
        %995 = vmatpush1.msra.mxu0 %v976
        %996 = vmatprep.subr.mxu0 %v975
        %997 = vmatpush1.msra.mxu0 %v974
        %998 = vmatprep.subr.mxu0 %v973
        %999 = vmatpush1.msra.mxu0 %v972
        %1000 = vmatprep.subr.mxu0 %v971
        %1001 = vmatpush1.msra.mxu0 %v970
        %1002 = vmatprep.subr.mxu0 %v969
        %1003 = vmatpush1.msra.mxu0 %v968
        %1004 = vmatprep.subr.mxu0 %v967
        %1005 = vmatpush1.msra.mxu0 %v966
        %1006 = vmatprep.subr.mxu0 %v965
        %1007 = vmatpush1.msra.mxu0 %v964
        %1008 = vmatprep.subr.mxu0 %v963
        %1009 = vmatpush1.msra.mxu0 %v962
        %1010 = vmatprep.subr.mxu0 %v961
        %1011 = vmatpush1.msra.mxu0 %v960
        %1012 = vmatprep.subr.mxu0 %v959
        %1013 = vmatpush1.msra.mxu0 %v958
        %1014 = vmatprep.subr.mxu0 %v957
        %1015 = vmatpush1.msra.mxu0 %v956
        %1016 = vmatprep.subr.mxu0 %v955
        %1017 = vmatpush1.msra.mxu0 %v954
        %1018 = vmatprep.subr.mxu0 %v953
        %1019 = vmatpush1.msra.mxu0 %v952
        %1020 = vmatprep.subr.mxu0 %v951
        %1021 = vmatpush1.msra.mxu0 %v950
        %1022 = vmatprep.subr.mxu0 0.0
        %1023 = vmatpush2.msra.mxu0 0.0
        %1024 = vmatprep.subr.mxu0 0.0
        %1025 = vmatpush2.msra.mxu0 0.0
        %1026 = vmatprep.subr.mxu0 0.0
        %1027 = vmatpush2.msra.mxu0 0.0
        %1028 = vmatprep.subr.mxu0 0.0
        %1029 = vmatpush2.msra.mxu0 0.0
        %1030 = vmatprep.subr.mxu0 0.0
        %1031 = vmatpush2.msra.mxu0 0.0
        %1032 = vmatprep.subr.mxu0 0.0
        %1033 = vmatpush2.msra.mxu0 0.0
        %1034 = vmatprep.subr.mxu0 0.0
        %1035 = vmatpush2.msra.mxu0 0.0
        %1036 = vmatprep.subr.mxu0 0.0
        %1037 = vmatpush2.msra.mxu0 0.0
        %1038 = vmatprep.subr.mxu0 0.0
        %1039 = vmatpush2.msra.mxu0 0.0
        %1040 = vmatprep.subr.mxu0 0.0
        %1041 = vmatpush2.msra.mxu0 0.0
        %1042 = vmatprep.subr.mxu0 0.0
        %1043 = vmatpush2.msra.mxu0 0.0
        %1044 = vmatprep.subr.mxu0 0.0
        %1045 = vmatpush2.msra.mxu0 0.0
        %1046 = vmatprep.subr.mxu0 0.0
        %1047 = vmatpush2.msra.mxu0 0.0
        %1048 = vmatprep.subr.mxu0 0.0
        %1049 = vmatpush2.msra.mxu0 0.0
        %1050 = vmatprep.subr.mxu0 0.0
        %1051 = vmatpush2.msra.mxu0 0.0
        %1052 = vmatprep.subr.mxu0 0.0
        %1053 = vmatpush2.msra.mxu0 0.0
        %1054 = vmatprep.mubr.f32.mxu0 0.0
        %1055 = vmatmul.mubr.f32.gmra.mxu0 %v339
        %v1056 = vpop.f32.mrf.mxu0
        %v1057 = vadd.f32 %v985, %v1056
        %v1058 = vpop.f32.mrf.mxu0
        %v1059 = vadd.f32 %v989, %v1058
        %1060 = vmatprep.mubr.f32.mxu0 0.0
        %1061 = vmatmul.mubr.f32.gmra.mxu0 %v340
        %v1062 = vpop.f32.mrf.mxu0
        %v1063 = vadd.f32 %v985, %v1062
        %v1064 = vpop.f32.mrf.mxu0
        %v1065 = vadd.f32 %v989, %v1064
        %1066 = vmatprep.mubr.f32.mxu0 0.0
        %1067 = vmatmul.mubr.f32.gmra.mxu0 %v341
        %v1068 = vpop.f32.mrf.mxu0
        %v1069 = vadd.f32 %v985, %v1068
        %v1070 = vpop.f32.mrf.mxu0
        %v1071 = vadd.f32 %v989, %v1070
        %1072 = vmatprep.mubr.f32.mxu0 0.0
        %1073 = vmatmul.mubr.f32.gmra.mxu0 %v342
        %v1074 = vpop.f32.mrf.mxu0
        %v1075 = vadd.f32 %v985, %v1074
        %v1076 = vpop.f32.mrf.mxu0
        %v1077 = vadd.f32 %v989, %v1076
        %1078 = vdwg.mxu0
        %v1079 = vxor.u32 %v1057, 2147483648
        %v1080 = vxor.u32 %v1059, 2147483648
        %v1081 = vxor.u32 %v1063, 2147483648
        %v1082 = vxor.u32 %v1065, 2147483648
        %v1083 = vxor.u32 %v1069, 2147483648
        %v1084 = vxor.u32 %v1071, 2147483648
        %v1085 = vxor.u32 %v1075, 2147483648
        %v1086 = vxor.u32 %v1077, 2147483648
        %v1087 = vmul.f32 %v1079, 1.442695
        %v1088 = vpow.pop %v1087
        %v1089 = vmul.f32 %v1080, 1.442695
        %v1090 = vpow.pop %v1089
        %v1091 = vmul.f32 %v1081, 1.442695
        %v1092 = vpow.pop %v1091
        %v1093 = vmul.f32 %v1082, 1.442695
        %v1094 = vpow.pop %v1093
        %v1095 = vmul.f32 %v1083, 1.442695
        %v1096 = vpow.pop %v1095
        %v1097 = vmul.f32 %v1084, 1.442695
        %v1098 = vpow.pop %v1097
        %v1099 = vmul.f32 %v1085, 1.442695
        %v1100 = vpow.pop %v1099
        %v1101 = vmul.f32 %v1086, 1.442695
        %v1102 = vpow.pop %v1101
        %v1103 = vadd.f32 %v1088, 1.0
        %v1104 = vadd.f32 %v1090, 1.0
        %v1105 = vadd.f32 %v1092, 1.0
        %v1106 = vadd.f32 %v1094, 1.0
        %v1107 = vadd.f32 %v1096, 1.0
        %v1108 = vadd.f32 %v1098, 1.0
        %v1109 = vadd.f32 %v1100, 1.0
        %v1110 = vadd.f32 %v1102, 1.0
        %v1111 = vrcp.pop %v1103
        %v1112 = vmul.f32 1.0, %v1111
        %v1113 = vrcp.pop %v1104
        %v1114 = vmul.f32 1.0, %v1113
        %v1115 = vrcp.pop %v1105
        %v1116 = vmul.f32 1.0, %v1115
        %v1117 = vrcp.pop %v1106
        %v1118 = vmul.f32 1.0, %v1117
        %v1119 = vrcp.pop %v1107
        %v1120 = vmul.f32 1.0, %v1119
        %v1121 = vrcp.pop %v1108
        %v1122 = vmul.f32 1.0, %v1121
        %v1123 = vrcp.pop %v1109
        %v1124 = vmul.f32 1.0, %v1123
        %v1125 = vrcp.pop %v1110
        %v1126 = vmul.f32 1.0, %v1125
        %v1127 = vlaneseq
        %v1128 = vshrl.u32 %v1127, 7
        %v1129 = vsub.s32 6, %v1128
        %v1130 = vrot.slane %v345, %v1129
        %v1131 = vmul.f32 %v1112, %v1130
        %v1132 = vmul.f32 %v1116, %v1130
        %v1133 = vmul.f32 %v1120, %v1130
        %v1134 = vmul.f32 %v1124, %v1130
        %v1135 = vadd.f32 %v945, %v1131
        %v1136 = vadd.f32 %v946, %v1132
        %v1137 = vadd.f32 %v947, %v1133
        %v1138 = vadd.f32 %v948, %v1134
        %v1139 = vlaneseq
        %v1140 = vshrl.u32 %v1139, 7
        %v1141 = vsub.s32 7, %v1140
        %v1142 = vrot.slane %v345, %v1141
        %v1143 = vmul.f32 %v1114, %v1142
        %v1144 = vmul.f32 %v1118, %v1142
        %v1145 = vmul.f32 %v1122, %v1142
        %v1146 = vmul.f32 %v1126, %v1142
        %v1147 = vadd.f32 %v1135, %v1143
        %v1148 = vadd.f32 %v1136, %v1144
        %v1149 = vadd.f32 %v1137, %v1145
        %v1150 = vadd.f32 %v1138, %v1146
        %s1151 = scalar_lea.vmem [#allocation5], 1024
        %v1152 = vld [vmem:[%s1151] sm:$0xff]
        %v1153 = vld [vmem:[%s1151 + $0x8] sm:$0xff]
        %v1154 = vld [vmem:[%s1151 + $0x10] sm:$0xff]
        %v1155 = vld [vmem:[%s1151 + $0x18] sm:$0xff]
        %v1156 = vld [vmem:[%s1151 + $0x20] sm:$0xff]
        %v1157 = vld [vmem:[%s1151 + $0x28] sm:$0xff]
        %v1158 = vld [vmem:[%s1151 + $0x30] sm:$0xff]
        %v1159 = vld [vmem:[%s1151 + $0x38] sm:$0xff]
        %v1160 = vld [vmem:[%s1151 + $0x40] sm:$0xff]
        %v1161 = vld [vmem:[%s1151 + $0x48] sm:$0xff]
        %v1162 = vld [vmem:[%s1151 + $0x50] sm:$0xff]
        %v1163 = vld [vmem:[%s1151 + $0x58] sm:$0xff]
        %v1164 = vld [vmem:[%s1151 + $0x60] sm:$0xff]
        %v1165 = vld [vmem:[%s1151 + $0x68] sm:$0xff]
        %v1166 = vld [vmem:[%s1151 + $0x70] sm:$0xff]
        %v1167 = vld [vmem:[%s1151 + $0x78] sm:$0xff]
        %v1168 = vld [vmem:[%s1151 + $0x80] sm:$0xff]
        %v1169 = vld [vmem:[%s1151 + $0x88] sm:$0xff]
        %v1170 = vld [vmem:[%s1151 + $0x90] sm:$0xff]
        %v1171 = vld [vmem:[%s1151 + $0x98] sm:$0xff]
        %v1172 = vld [vmem:[%s1151 + $0xa0] sm:$0xff]
        %v1173 = vld [vmem:[%s1151 + $0xa8] sm:$0xff]
        %v1174 = vld [vmem:[%s1151 + $0xb0] sm:$0xff]
        %v1175 = vld [vmem:[%s1151 + $0xb8] sm:$0xff]
        %v1176 = vld [vmem:[%s1151 + $0xc0] sm:$0xff]
        %v1177 = vld [vmem:[%s1151 + $0xc8] sm:$0xff]
        %v1178 = vld [vmem:[%s1151 + $0xd0] sm:$0xff]
        %v1179 = vld [vmem:[%s1151 + $0xd8] sm:$0xff]
        %v1180 = vld [vmem:[%s1151 + $0xe0] sm:$0xff]
        %v1181 = vld [vmem:[%s1151 + $0xe8] sm:$0xff]
        %v1182 = vld [vmem:[%s1151 + $0xf0] sm:$0xff]
        %v1183 = vld [vmem:[%s1151 + $0xf8] sm:$0xff]
        %v1184 = vlaneseq
        %v1185 = vshrl.u32 %v1184, 7
        %v1186 = vsub.s32 4, %v1185
        %v1187 = vrot.slane %v343, %v1186
        %v1188 = vlaneseq
        %v1189 = vshrl.u32 %v1188, 7
        %v1190 = vsub.s32 4, %v1189
        %v1191 = vrot.slane %v344, %v1190
        %1192 = vmatprep.subr.mxu0 %v1183
        %1193 = vmatpush1.msra.mxu0 %v1182
        %1194 = vmatprep.subr.mxu0 %v1181
        %1195 = vmatpush1.msra.mxu0 %v1180
        %1196 = vmatprep.subr.mxu0 %v1179
        %1197 = vmatpush1.msra.mxu0 %v1178
        %1198 = vmatprep.subr.mxu0 %v1177
        %1199 = vmatpush1.msra.mxu0 %v1176
        %1200 = vmatprep.subr.mxu0 %v1175
        %1201 = vmatpush1.msra.mxu0 %v1174
        %1202 = vmatprep.subr.mxu0 %v1173
        %1203 = vmatpush1.msra.mxu0 %v1172
        %1204 = vmatprep.subr.mxu0 %v1171
        %1205 = vmatpush1.msra.mxu0 %v1170
        %1206 = vmatprep.subr.mxu0 %v1169
        %1207 = vmatpush1.msra.mxu0 %v1168
        %1208 = vmatprep.subr.mxu0 %v1167
        %1209 = vmatpush1.msra.mxu0 %v1166
        %1210 = vmatprep.subr.mxu0 %v1165
        %1211 = vmatpush1.msra.mxu0 %v1164
        %1212 = vmatprep.subr.mxu0 %v1163
        %1213 = vmatpush1.msra.mxu0 %v1162
        %1214 = vmatprep.subr.mxu0 %v1161
        %1215 = vmatpush1.msra.mxu0 %v1160
        %1216 = vmatprep.subr.mxu0 %v1159
        %1217 = vmatpush1.msra.mxu0 %v1158
        %1218 = vmatprep.subr.mxu0 %v1157
        %1219 = vmatpush1.msra.mxu0 %v1156
        %1220 = vmatprep.subr.mxu0 %v1155
        %1221 = vmatpush1.msra.mxu0 %v1154
        %1222 = vmatprep.subr.mxu0 %v1153
        %1223 = vmatpush1.msra.mxu0 %v1152
        %1224 = vmatprep.subr.mxu0 0.0
        %1225 = vmatpush2.msra.mxu0 0.0
        %1226 = vmatprep.subr.mxu0 0.0
        %1227 = vmatpush2.msra.mxu0 0.0
        %1228 = vmatprep.subr.mxu0 0.0
        %1229 = vmatpush2.msra.mxu0 0.0
        %1230 = vmatprep.subr.mxu0 0.0
        %1231 = vmatpush2.msra.mxu0 0.0
        %1232 = vmatprep.subr.mxu0 0.0
        %1233 = vmatpush2.msra.mxu0 0.0
        %1234 = vmatprep.subr.mxu0 0.0
        %1235 = vmatpush2.msra.mxu0 0.0
        %1236 = vmatprep.subr.mxu0 0.0
        %1237 = vmatpush2.msra.mxu0 0.0
        %1238 = vmatprep.subr.mxu0 0.0
        %1239 = vmatpush2.msra.mxu0 0.0
        %1240 = vmatprep.subr.mxu0 0.0
        %1241 = vmatpush2.msra.mxu0 0.0
        %1242 = vmatprep.subr.mxu0 0.0
        %1243 = vmatpush2.msra.mxu0 0.0
        %1244 = vmatprep.subr.mxu0 0.0
        %1245 = vmatpush2.msra.mxu0 0.0
        %1246 = vmatprep.subr.mxu0 0.0
        %1247 = vmatpush2.msra.mxu0 0.0
        %1248 = vmatprep.subr.mxu0 0.0
        %1249 = vmatpush2.msra.mxu0 0.0
        %1250 = vmatprep.subr.mxu0 0.0
        %1251 = vmatpush2.msra.mxu0 0.0
        %1252 = vmatprep.subr.mxu0 0.0
        %1253 = vmatpush2.msra.mxu0 0.0
        %1254 = vmatprep.subr.mxu0 0.0
        %1255 = vmatpush2.msra.mxu0 0.0
        %1256 = vmatprep.mubr.f32.mxu0 0.0
        %1257 = vmatmul.mubr.f32.gmra.mxu0 %v339
        %v1258 = vpop.f32.mrf.mxu0
        %v1259 = vadd.f32 %v1187, %v1258
        %v1260 = vpop.f32.mrf.mxu0
        %v1261 = vadd.f32 %v1191, %v1260
        %1262 = vmatprep.mubr.f32.mxu0 0.0
        %1263 = vmatmul.mubr.f32.gmra.mxu0 %v340
        %v1264 = vpop.f32.mrf.mxu0
        %v1265 = vadd.f32 %v1187, %v1264
        %v1266 = vpop.f32.mrf.mxu0
        %v1267 = vadd.f32 %v1191, %v1266
        %1268 = vmatprep.mubr.f32.mxu0 0.0
        %1269 = vmatmul.mubr.f32.gmra.mxu0 %v341
        %v1270 = vpop.f32.mrf.mxu0
        %v1271 = vadd.f32 %v1187, %v1270
        %v1272 = vpop.f32.mrf.mxu0
        %v1273 = vadd.f32 %v1191, %v1272
        %1274 = vmatprep.mubr.f32.mxu0 0.0
        %1275 = vmatmul.mubr.f32.gmra.mxu0 %v342
        %v1276 = vpop.f32.mrf.mxu0
        %v1277 = vadd.f32 %v1187, %v1276
        %v1278 = vpop.f32.mrf.mxu0
        %v1279 = vadd.f32 %v1191, %v1278
        %1280 = vdwg.mxu0
        %v1281 = vxor.u32 %v1259, 2147483648
        %v1282 = vxor.u32 %v1261, 2147483648
        %v1283 = vxor.u32 %v1265, 2147483648
        %v1284 = vxor.u32 %v1267, 2147483648
        %v1285 = vxor.u32 %v1271, 2147483648
        %v1286 = vxor.u32 %v1273, 2147483648
        %v1287 = vxor.u32 %v1277, 2147483648
        %v1288 = vxor.u32 %v1279, 2147483648
        %v1289 = vmul.f32 %v1281, 1.442695
        %v1290 = vpow.pop %v1289
        %v1291 = vmul.f32 %v1282, 1.442695
        %v1292 = vpow.pop %v1291
        %v1293 = vmul.f32 %v1283, 1.442695
        %v1294 = vpow.pop %v1293
        %v1295 = vmul.f32 %v1284, 1.442695
        %v1296 = vpow.pop %v1295
        %v1297 = vmul.f32 %v1285, 1.442695
        %v1298 = vpow.pop %v1297
        %v1299 = vmul.f32 %v1286, 1.442695
        %v1300 = vpow.pop %v1299
        %v1301 = vmul.f32 %v1287, 1.442695
        %v1302 = vpow.pop %v1301
        %v1303 = vmul.f32 %v1288, 1.442695
        %v1304 = vpow.pop %v1303
        %v1305 = vadd.f32 %v1290, 1.0
        %v1306 = vadd.f32 %v1292, 1.0
        %v1307 = vadd.f32 %v1294, 1.0
        %v1308 = vadd.f32 %v1296, 1.0
        %v1309 = vadd.f32 %v1298, 1.0
        %v1310 = vadd.f32 %v1300, 1.0
        %v1311 = vadd.f32 %v1302, 1.0
        %v1312 = vadd.f32 %v1304, 1.0
        %v1313 = vrcp.pop %v1305
        %v1314 = vmul.f32 1.0, %v1313
        %v1315 = vrcp.pop %v1306
        %v1316 = vmul.f32 1.0, %v1315
        %v1317 = vrcp.pop %v1307
        %v1318 = vmul.f32 1.0, %v1317
        %v1319 = vrcp.pop %v1308
        %v1320 = vmul.f32 1.0, %v1319
        %v1321 = vrcp.pop %v1309
        %v1322 = vmul.f32 1.0, %v1321
        %v1323 = vrcp.pop %v1310
        %v1324 = vmul.f32 1.0, %v1323
        %v1325 = vrcp.pop %v1311
        %v1326 = vmul.f32 1.0, %v1325
        %v1327 = vrcp.pop %v1312
        %v1328 = vmul.f32 1.0, %v1327
        %v1329 = vlaneseq
        %v1330 = vshrl.u32 %v1329, 7
        %v1331 = vsub.s32 0, %v1330
        %v1332 = vrot.slane %v346, %v1331
        %v1333 = vmul.f32 %v1314, %v1332
        %v1334 = vmul.f32 %v1318, %v1332
        %v1335 = vmul.f32 %v1322, %v1332
        %v1336 = vmul.f32 %v1326, %v1332
        %v1337 = vadd.f32 %v1147, %v1333
        %v1338 = vadd.f32 %v1148, %v1334
        %v1339 = vadd.f32 %v1149, %v1335
        %v1340 = vadd.f32 %v1150, %v1336
        %v1341 = vlaneseq
        %v1342 = vshrl.u32 %v1341, 7
        %v1343 = vsub.s32 1, %v1342
        %v1344 = vrot.slane %v346, %v1343
        %v1345 = vmul.f32 %v1316, %v1344
        %v1346 = vmul.f32 %v1320, %v1344
        %v1347 = vmul.f32 %v1324, %v1344
        %v1348 = vmul.f32 %v1328, %v1344
        %v1349 = vadd.f32 %v1337, %v1345
        %v1350 = vadd.f32 %v1338, %v1346
        %v1351 = vadd.f32 %v1339, %v1347
        %v1352 = vadd.f32 %v1340, %v1348
        %s1353 = scalar_lea.vmem [#allocation5], 1280
        %v1354 = vld [vmem:[%s1353] sm:$0xff]
        %v1355 = vld [vmem:[%s1353 + $0x8] sm:$0xff]
        %v1356 = vld [vmem:[%s1353 + $0x10] sm:$0xff]
        %v1357 = vld [vmem:[%s1353 + $0x18] sm:$0xff]
        %v1358 = vld [vmem:[%s1353 + $0x20] sm:$0xff]
        %v1359 = vld [vmem:[%s1353 + $0x28] sm:$0xff]
        %v1360 = vld [vmem:[%s1353 + $0x30] sm:$0xff]
        %v1361 = vld [vmem:[%s1353 + $0x38] sm:$0xff]
        %v1362 = vld [vmem:[%s1353 + $0x40] sm:$0xff]
        %v1363 = vld [vmem:[%s1353 + $0x48] sm:$0xff]
        %v1364 = vld [vmem:[%s1353 + $0x50] sm:$0xff]
        %v1365 = vld [vmem:[%s1353 + $0x58] sm:$0xff]
        %v1366 = vld [vmem:[%s1353 + $0x60] sm:$0xff]
        %v1367 = vld [vmem:[%s1353 + $0x68] sm:$0xff]
        %v1368 = vld [vmem:[%s1353 + $0x70] sm:$0xff]
        %v1369 = vld [vmem:[%s1353 + $0x78] sm:$0xff]
        %v1370 = vld [vmem:[%s1353 + $0x80] sm:$0xff]
        %v1371 = vld [vmem:[%s1353 + $0x88] sm:$0xff]
        %v1372 = vld [vmem:[%s1353 + $0x90] sm:$0xff]
        %v1373 = vld [vmem:[%s1353 + $0x98] sm:$0xff]
        %v1374 = vld [vmem:[%s1353 + $0xa0] sm:$0xff]
        %v1375 = vld [vmem:[%s1353 + $0xa8] sm:$0xff]
        %v1376 = vld [vmem:[%s1353 + $0xb0] sm:$0xff]
        %v1377 = vld [vmem:[%s1353 + $0xb8] sm:$0xff]
        %v1378 = vld [vmem:[%s1353 + $0xc0] sm:$0xff]
        %v1379 = vld [vmem:[%s1353 + $0xc8] sm:$0xff]
        %v1380 = vld [vmem:[%s1353 + $0xd0] sm:$0xff]
        %v1381 = vld [vmem:[%s1353 + $0xd8] sm:$0xff]
        %v1382 = vld [vmem:[%s1353 + $0xe0] sm:$0xff]
        %v1383 = vld [vmem:[%s1353 + $0xe8] sm:$0xff]
        %v1384 = vld [vmem:[%s1353 + $0xf0] sm:$0xff]
        %v1385 = vld [vmem:[%s1353 + $0xf8] sm:$0xff]
        %v1386 = vlaneseq
        %v1387 = vshrl.u32 %v1386, 7
        %v1388 = vsub.s32 5, %v1387
        %v1389 = vrot.slane %v343, %v1388
        %v1390 = vlaneseq
        %v1391 = vshrl.u32 %v1390, 7
        %v1392 = vsub.s32 5, %v1391
        %v1393 = vrot.slane %v344, %v1392
        %1394 = vmatprep.subr.mxu0 %v1385
        %1395 = vmatpush1.msra.mxu0 %v1384
        %1396 = vmatprep.subr.mxu0 %v1383
        %1397 = vmatpush1.msra.mxu0 %v1382
        %1398 = vmatprep.subr.mxu0 %v1381
        %1399 = vmatpush1.msra.mxu0 %v1380
        %1400 = vmatprep.subr.mxu0 %v1379
        %1401 = vmatpush1.msra.mxu0 %v1378
        %1402 = vmatprep.subr.mxu0 %v1377
        %1403 = vmatpush1.msra.mxu0 %v1376
        %1404 = vmatprep.subr.mxu0 %v1375
        %1405 = vmatpush1.msra.mxu0 %v1374
        %1406 = vmatprep.subr.mxu0 %v1373
        %1407 = vmatpush1.msra.mxu0 %v1372
        %1408 = vmatprep.subr.mxu0 %v1371
        %1409 = vmatpush1.msra.mxu0 %v1370
        %1410 = vmatprep.subr.mxu0 %v1369
        %1411 = vmatpush1.msra.mxu0 %v1368
        %1412 = vmatprep.subr.mxu0 %v1367
        %1413 = vmatpush1.msra.mxu0 %v1366
        %1414 = vmatprep.subr.mxu0 %v1365
        %1415 = vmatpush1.msra.mxu0 %v1364
        %1416 = vmatprep.subr.mxu0 %v1363
        %1417 = vmatpush1.msra.mxu0 %v1362
        %1418 = vmatprep.subr.mxu0 %v1361
        %1419 = vmatpush1.msra.mxu0 %v1360
        %1420 = vmatprep.subr.mxu0 %v1359
        %1421 = vmatpush1.msra.mxu0 %v1358
        %1422 = vmatprep.subr.mxu0 %v1357
        %1423 = vmatpush1.msra.mxu0 %v1356
        %1424 = vmatprep.subr.mxu0 %v1355
        %1425 = vmatpush1.msra.mxu0 %v1354
        %1426 = vmatprep.subr.mxu0 0.0
        %1427 = vmatpush2.msra.mxu0 0.0
        %1428 = vmatprep.subr.mxu0 0.0
        %1429 = vmatpush2.msra.mxu0 0.0
        %1430 = vmatprep.subr.mxu0 0.0
        %1431 = vmatpush2.msra.mxu0 0.0
        %1432 = vmatprep.subr.mxu0 0.0
        %1433 = vmatpush2.msra.mxu0 0.0
        %1434 = vmatprep.subr.mxu0 0.0
        %1435 = vmatpush2.msra.mxu0 0.0
        %1436 = vmatprep.subr.mxu0 0.0
        %1437 = vmatpush2.msra.mxu0 0.0
        %1438 = vmatprep.subr.mxu0 0.0
        %1439 = vmatpush2.msra.mxu0 0.0
        %1440 = vmatprep.subr.mxu0 0.0
        %1441 = vmatpush2.msra.mxu0 0.0
        %1442 = vmatprep.subr.mxu0 0.0
        %1443 = vmatpush2.msra.mxu0 0.0
        %1444 = vmatprep.subr.mxu0 0.0
        %1445 = vmatpush2.msra.mxu0 0.0
        %1446 = vmatprep.subr.mxu0 0.0
        %1447 = vmatpush2.msra.mxu0 0.0
        %1448 = vmatprep.subr.mxu0 0.0
        %1449 = vmatpush2.msra.mxu0 0.0
        %1450 = vmatprep.subr.mxu0 0.0
        %1451 = vmatpush2.msra.mxu0 0.0
        %1452 = vmatprep.subr.mxu0 0.0
        %1453 = vmatpush2.msra.mxu0 0.0
        %1454 = vmatprep.subr.mxu0 0.0
        %1455 = vmatpush2.msra.mxu0 0.0
        %1456 = vmatprep.subr.mxu0 0.0
        %1457 = vmatpush2.msra.mxu0 0.0
        %1458 = vmatprep.mubr.f32.mxu0 0.0
        %1459 = vmatmul.mubr.f32.gmra.mxu0 %v339
        %v1460 = vpop.f32.mrf.mxu0
        %v1461 = vadd.f32 %v1389, %v1460
        %v1462 = vpop.f32.mrf.mxu0
        %v1463 = vadd.f32 %v1393, %v1462
        %1464 = vmatprep.mubr.f32.mxu0 0.0
        %1465 = vmatmul.mubr.f32.gmra.mxu0 %v340
        %v1466 = vpop.f32.mrf.mxu0
        %v1467 = vadd.f32 %v1389, %v1466
        %v1468 = vpop.f32.mrf.mxu0
        %v1469 = vadd.f32 %v1393, %v1468
        %1470 = vmatprep.mubr.f32.mxu0 0.0
        %1471 = vmatmul.mubr.f32.gmra.mxu0 %v341
        %v1472 = vpop.f32.mrf.mxu0
        %v1473 = vadd.f32 %v1389, %v1472
        %v1474 = vpop.f32.mrf.mxu0
        %v1475 = vadd.f32 %v1393, %v1474
        %1476 = vmatprep.mubr.f32.mxu0 0.0
        %1477 = vmatmul.mubr.f32.gmra.mxu0 %v342
        %v1478 = vpop.f32.mrf.mxu0
        %v1479 = vadd.f32 %v1389, %v1478
        %v1480 = vpop.f32.mrf.mxu0
        %v1481 = vadd.f32 %v1393, %v1480
        %1482 = vdwg.mxu0
        %v1483 = vxor.u32 %v1461, 2147483648
        %v1484 = vxor.u32 %v1463, 2147483648
        %v1485 = vxor.u32 %v1467, 2147483648
        %v1486 = vxor.u32 %v1469, 2147483648
        %v1487 = vxor.u32 %v1473, 2147483648
        %v1488 = vxor.u32 %v1475, 2147483648
        %v1489 = vxor.u32 %v1479, 2147483648
        %v1490 = vxor.u32 %v1481, 2147483648
        %v1491 = vmul.f32 %v1483, 1.442695
        %v1492 = vpow.pop %v1491
        %v1493 = vmul.f32 %v1484, 1.442695
        %v1494 = vpow.pop %v1493
        %v1495 = vmul.f32 %v1485, 1.442695
        %v1496 = vpow.pop %v1495
        %v1497 = vmul.f32 %v1486, 1.442695
        %v1498 = vpow.pop %v1497
        %v1499 = vmul.f32 %v1487, 1.442695
        %v1500 = vpow.pop %v1499
        %v1501 = vmul.f32 %v1488, 1.442695
        %v1502 = vpow.pop %v1501
        %v1503 = vmul.f32 %v1489, 1.442695
        %v1504 = vpow.pop %v1503
        %v1505 = vmul.f32 %v1490, 1.442695
        %v1506 = vpow.pop %v1505
        %v1507 = vadd.f32 %v1492, 1.0
        %v1508 = vadd.f32 %v1494, 1.0
        %v1509 = vadd.f32 %v1496, 1.0
        %v1510 = vadd.f32 %v1498, 1.0
        %v1511 = vadd.f32 %v1500, 1.0
        %v1512 = vadd.f32 %v1502, 1.0
        %v1513 = vadd.f32 %v1504, 1.0
        %v1514 = vadd.f32 %v1506, 1.0
        %v1515 = vrcp.pop %v1507
        %v1516 = vmul.f32 1.0, %v1515
        %v1517 = vrcp.pop %v1508
        %v1518 = vmul.f32 1.0, %v1517
        %v1519 = vrcp.pop %v1509
        %v1520 = vmul.f32 1.0, %v1519
        %v1521 = vrcp.pop %v1510
        %v1522 = vmul.f32 1.0, %v1521
        %v1523 = vrcp.pop %v1511
        %v1524 = vmul.f32 1.0, %v1523
        %v1525 = vrcp.pop %v1512
        %v1526 = vmul.f32 1.0, %v1525
        %v1527 = vrcp.pop %v1513
        %v1528 = vmul.f32 1.0, %v1527
        %v1529 = vrcp.pop %v1514
        %v1530 = vmul.f32 1.0, %v1529
        %v1531 = vlaneseq
        %v1532 = vshrl.u32 %v1531, 7
        %v1533 = vsub.s32 2, %v1532
        %v1534 = vrot.slane %v346, %v1533
        %v1535 = vmul.f32 %v1516, %v1534
        %v1536 = vmul.f32 %v1520, %v1534
        %v1537 = vmul.f32 %v1524, %v1534
        %v1538 = vmul.f32 %v1528, %v1534
        %v1539 = vadd.f32 %v1349, %v1535
        %v1540 = vadd.f32 %v1350, %v1536
        %v1541 = vadd.f32 %v1351, %v1537
        %v1542 = vadd.f32 %v1352, %v1538
        %v1543 = vlaneseq
        %v1544 = vshrl.u32 %v1543, 7
        %v1545 = vsub.s32 3, %v1544
        %v1546 = vrot.slane %v346, %v1545
        %v1547 = vmul.f32 %v1518, %v1546
        %v1548 = vmul.f32 %v1522, %v1546
        %v1549 = vmul.f32 %v1526, %v1546
        %v1550 = vmul.f32 %v1530, %v1546
        %v1551 = vadd.f32 %v1539, %v1547
        %v1552 = vadd.f32 %v1540, %v1548
        %v1553 = vadd.f32 %v1541, %v1549
        %v1554 = vadd.f32 %v1542, %v1550
        %s1555 = scalar_lea.vmem [#allocation5], 1536
        %v1556 = vld [vmem:[%s1555] sm:$0xff]
        %v1557 = vld [vmem:[%s1555 + $0x8] sm:$0xff]
        %v1558 = vld [vmem:[%s1555 + $0x10] sm:$0xff]
        %v1559 = vld [vmem:[%s1555 + $0x18] sm:$0xff]
        %v1560 = vld [vmem:[%s1555 + $0x20] sm:$0xff]
        %v1561 = vld [vmem:[%s1555 + $0x28] sm:$0xff]
        %v1562 = vld [vmem:[%s1555 + $0x30] sm:$0xff]
        %v1563 = vld [vmem:[%s1555 + $0x38] sm:$0xff]
        %v1564 = vld [vmem:[%s1555 + $0x40] sm:$0xff]
        %v1565 = vld [vmem:[%s1555 + $0x48] sm:$0xff]
        %v1566 = vld [vmem:[%s1555 + $0x50] sm:$0xff]
        %v1567 = vld [vmem:[%s1555 + $0x58] sm:$0xff]
        %v1568 = vld [vmem:[%s1555 + $0x60] sm:$0xff]
        %v1569 = vld [vmem:[%s1555 + $0x68] sm:$0xff]
        %v1570 = vld [vmem:[%s1555 + $0x70] sm:$0xff]
        %v1571 = vld [vmem:[%s1555 + $0x78] sm:$0xff]
        %v1572 = vld [vmem:[%s1555 + $0x80] sm:$0xff]
        %v1573 = vld [vmem:[%s1555 + $0x88] sm:$0xff]
        %v1574 = vld [vmem:[%s1555 + $0x90] sm:$0xff]
        %v1575 = vld [vmem:[%s1555 + $0x98] sm:$0xff]
        %v1576 = vld [vmem:[%s1555 + $0xa0] sm:$0xff]
        %v1577 = vld [vmem:[%s1555 + $0xa8] sm:$0xff]
        %v1578 = vld [vmem:[%s1555 + $0xb0] sm:$0xff]
        %v1579 = vld [vmem:[%s1555 + $0xb8] sm:$0xff]
        %v1580 = vld [vmem:[%s1555 + $0xc0] sm:$0xff]
        %v1581 = vld [vmem:[%s1555 + $0xc8] sm:$0xff]
        %v1582 = vld [vmem:[%s1555 + $0xd0] sm:$0xff]
        %v1583 = vld [vmem:[%s1555 + $0xd8] sm:$0xff]
        %v1584 = vld [vmem:[%s1555 + $0xe0] sm:$0xff]
        %v1585 = vld [vmem:[%s1555 + $0xe8] sm:$0xff]
        %v1586 = vld [vmem:[%s1555 + $0xf0] sm:$0xff]
        %v1587 = vld [vmem:[%s1555 + $0xf8] sm:$0xff]
        %v1588 = vlaneseq
        %v1589 = vshrl.u32 %v1588, 7
        %v1590 = vsub.s32 6, %v1589
        %v1591 = vrot.slane %v343, %v1590
        %v1592 = vlaneseq
        %v1593 = vshrl.u32 %v1592, 7
        %v1594 = vsub.s32 6, %v1593
        %v1595 = vrot.slane %v344, %v1594
        %1596 = vmatprep.subr.mxu0 %v1587
        %1597 = vmatpush1.msra.mxu0 %v1586
        %1598 = vmatprep.subr.mxu0 %v1585
        %1599 = vmatpush1.msra.mxu0 %v1584
        %1600 = vmatprep.subr.mxu0 %v1583
        %1601 = vmatpush1.msra.mxu0 %v1582
        %1602 = vmatprep.subr.mxu0 %v1581
        %1603 = vmatpush1.msra.mxu0 %v1580
        %1604 = vmatprep.subr.mxu0 %v1579
        %1605 = vmatpush1.msra.mxu0 %v1578
        %1606 = vmatprep.subr.mxu0 %v1577
        %1607 = vmatpush1.msra.mxu0 %v1576
        %1608 = vmatprep.subr.mxu0 %v1575
        %1609 = vmatpush1.msra.mxu0 %v1574
        %1610 = vmatprep.subr.mxu0 %v1573
        %1611 = vmatpush1.msra.mxu0 %v1572
        %1612 = vmatprep.subr.mxu0 %v1571
        %1613 = vmatpush1.msra.mxu0 %v1570
        %1614 = vmatprep.subr.mxu0 %v1569
        %1615 = vmatpush1.msra.mxu0 %v1568
        %1616 = vmatprep.subr.mxu0 %v1567
        %1617 = vmatpush1.msra.mxu0 %v1566
        %1618 = vmatprep.subr.mxu0 %v1565
        %1619 = vmatpush1.msra.mxu0 %v1564
        %1620 = vmatprep.subr.mxu0 %v1563
        %1621 = vmatpush1.msra.mxu0 %v1562
        %1622 = vmatprep.subr.mxu0 %v1561
        %1623 = vmatpush1.msra.mxu0 %v1560
        %1624 = vmatprep.subr.mxu0 %v1559
        %1625 = vmatpush1.msra.mxu0 %v1558
        %1626 = vmatprep.subr.mxu0 %v1557
        %1627 = vmatpush1.msra.mxu0 %v1556
        %1628 = vmatprep.subr.mxu0 0.0
        %1629 = vmatpush2.msra.mxu0 0.0
        %1630 = vmatprep.subr.mxu0 0.0
        %1631 = vmatpush2.msra.mxu0 0.0
        %1632 = vmatprep.subr.mxu0 0.0
        %1633 = vmatpush2.msra.mxu0 0.0
        %1634 = vmatprep.subr.mxu0 0.0
        %1635 = vmatpush2.msra.mxu0 0.0
        %1636 = vmatprep.subr.mxu0 0.0
        %1637 = vmatpush2.msra.mxu0 0.0
        %1638 = vmatprep.subr.mxu0 0.0
        %1639 = vmatpush2.msra.mxu0 0.0
        %1640 = vmatprep.subr.mxu0 0.0
        %1641 = vmatpush2.msra.mxu0 0.0
        %1642 = vmatprep.subr.mxu0 0.0
        %1643 = vmatpush2.msra.mxu0 0.0
        %1644 = vmatprep.subr.mxu0 0.0
        %1645 = vmatpush2.msra.mxu0 0.0
        %1646 = vmatprep.subr.mxu0 0.0
        %1647 = vmatpush2.msra.mxu0 0.0
        %1648 = vmatprep.subr.mxu0 0.0
        %1649 = vmatpush2.msra.mxu0 0.0
        %1650 = vmatprep.subr.mxu0 0.0
        %1651 = vmatpush2.msra.mxu0 0.0
        %1652 = vmatprep.subr.mxu0 0.0
        %1653 = vmatpush2.msra.mxu0 0.0
        %1654 = vmatprep.subr.mxu0 0.0
        %1655 = vmatpush2.msra.mxu0 0.0
        %1656 = vmatprep.subr.mxu0 0.0
        %1657 = vmatpush2.msra.mxu0 0.0
        %1658 = vmatprep.subr.mxu0 0.0
        %1659 = vmatpush2.msra.mxu0 0.0
        %1660 = vmatprep.mubr.f32.mxu0 0.0
        %1661 = vmatmul.mubr.f32.gmra.mxu0 %v339
        %v1662 = vpop.f32.mrf.mxu0
        %v1663 = vadd.f32 %v1591, %v1662
        %v1664 = vpop.f32.mrf.mxu0
        %v1665 = vadd.f32 %v1595, %v1664
        %1666 = vmatprep.mubr.f32.mxu0 0.0
        %1667 = vmatmul.mubr.f32.gmra.mxu0 %v340
        %v1668 = vpop.f32.mrf.mxu0
        %v1669 = vadd.f32 %v1591, %v1668
        %v1670 = vpop.f32.mrf.mxu0
        %v1671 = vadd.f32 %v1595, %v1670
        %1672 = vmatprep.mubr.f32.mxu0 0.0
        %1673 = vmatmul.mubr.f32.gmra.mxu0 %v341
        %v1674 = vpop.f32.mrf.mxu0
        %v1675 = vadd.f32 %v1591, %v1674
        %v1676 = vpop.f32.mrf.mxu0
        %v1677 = vadd.f32 %v1595, %v1676
        %1678 = vmatprep.mubr.f32.mxu0 0.0
        %1679 = vmatmul.mubr.f32.gmra.mxu0 %v342
        %v1680 = vpop.f32.mrf.mxu0
        %v1681 = vadd.f32 %v1591, %v1680
        %v1682 = vpop.f32.mrf.mxu0
        %v1683 = vadd.f32 %v1595, %v1682
        %1684 = vdwg.mxu0
        %v1685 = vxor.u32 %v1663, 2147483648
        %v1686 = vxor.u32 %v1665, 2147483648
        %v1687 = vxor.u32 %v1669, 2147483648
        %v1688 = vxor.u32 %v1671, 2147483648
        %v1689 = vxor.u32 %v1675, 2147483648
        %v1690 = vxor.u32 %v1677, 2147483648
        %v1691 = vxor.u32 %v1681, 2147483648
        %v1692 = vxor.u32 %v1683, 2147483648
        %v1693 = vmul.f32 %v1685, 1.442695
        %v1694 = vpow.pop %v1693
        %v1695 = vmul.f32 %v1686, 1.442695
        %v1696 = vpow.pop %v1695
        %v1697 = vmul.f32 %v1687, 1.442695
        %v1698 = vpow.pop %v1697
        %v1699 = vmul.f32 %v1688, 1.442695
        %v1700 = vpow.pop %v1699
        %v1701 = vmul.f32 %v1689, 1.442695
        %v1702 = vpow.pop %v1701
        %v1703 = vmul.f32 %v1690, 1.442695
        %v1704 = vpow.pop %v1703
        %v1705 = vmul.f32 %v1691, 1.442695
        %v1706 = vpow.pop %v1705
        %v1707 = vmul.f32 %v1692, 1.442695
        %v1708 = vpow.pop %v1707
        %v1709 = vadd.f32 %v1694, 1.0
        %v1710 = vadd.f32 %v1696, 1.0
        %v1711 = vadd.f32 %v1698, 1.0
        %v1712 = vadd.f32 %v1700, 1.0
        %v1713 = vadd.f32 %v1702, 1.0
        %v1714 = vadd.f32 %v1704, 1.0
        %v1715 = vadd.f32 %v1706, 1.0
        %v1716 = vadd.f32 %v1708, 1.0
        %v1717 = vrcp.pop %v1709
        %v1718 = vmul.f32 1.0, %v1717
        %v1719 = vrcp.pop %v1710
        %v1720 = vmul.f32 1.0, %v1719
        %v1721 = vrcp.pop %v1711
        %v1722 = vmul.f32 1.0, %v1721
        %v1723 = vrcp.pop %v1712
        %v1724 = vmul.f32 1.0, %v1723
        %v1725 = vrcp.pop %v1713
        %v1726 = vmul.f32 1.0, %v1725
        %v1727 = vrcp.pop %v1714
        %v1728 = vmul.f32 1.0, %v1727
        %v1729 = vrcp.pop %v1715
        %v1730 = vmul.f32 1.0, %v1729
        %v1731 = vrcp.pop %v1716
        %v1732 = vmul.f32 1.0, %v1731
        %v1733 = vlaneseq
        %v1734 = vshrl.u32 %v1733, 7
        %v1735 = vsub.s32 4, %v1734
        %v1736 = vrot.slane %v346, %v1735
        %v1737 = vmul.f32 %v1718, %v1736
        %v1738 = vmul.f32 %v1722, %v1736
        %v1739 = vmul.f32 %v1726, %v1736
        %v1740 = vmul.f32 %v1730, %v1736
        %v1741 = vadd.f32 %v1551, %v1737
        %v1742 = vadd.f32 %v1552, %v1738
        %v1743 = vadd.f32 %v1553, %v1739
        %v1744 = vadd.f32 %v1554, %v1740
        %v1745 = vlaneseq
        %v1746 = vshrl.u32 %v1745, 7
        %v1747 = vsub.s32 5, %v1746
        %v1748 = vrot.slane %v346, %v1747
        %v1749 = vmul.f32 %v1720, %v1748
        %v1750 = vmul.f32 %v1724, %v1748
        %v1751 = vmul.f32 %v1728, %v1748
        %v1752 = vmul.f32 %v1732, %v1748
        %v1753 = vadd.f32 %v1741, %v1749
        %v1754 = vadd.f32 %v1742, %v1750
        %v1755 = vadd.f32 %v1743, %v1751
        %v1756 = vadd.f32 %v1744, %v1752
        %s1757 = scalar_lea.vmem [#allocation5], 1792
        %v1758 = vld [vmem:[%s1757] sm:$0xff]
        %v1759 = vld [vmem:[%s1757 + $0x8] sm:$0xff]
        %v1760 = vld [vmem:[%s1757 + $0x10] sm:$0xff]
        %v1761 = vld [vmem:[%s1757 + $0x18] sm:$0xff]
        %v1762 = vld [vmem:[%s1757 + $0x20] sm:$0xff]
        %v1763 = vld [vmem:[%s1757 + $0x28] sm:$0xff]
        %v1764 = vld [vmem:[%s1757 + $0x30] sm:$0xff]
        %v1765 = vld [vmem:[%s1757 + $0x38] sm:$0xff]
        %v1766 = vld [vmem:[%s1757 + $0x40] sm:$0xff]
        %v1767 = vld [vmem:[%s1757 + $0x48] sm:$0xff]
        %v1768 = vld [vmem:[%s1757 + $0x50] sm:$0xff]
        %v1769 = vld [vmem:[%s1757 + $0x58] sm:$0xff]
        %v1770 = vld [vmem:[%s1757 + $0x60] sm:$0xff]
        %v1771 = vld [vmem:[%s1757 + $0x68] sm:$0xff]
        %v1772 = vld [vmem:[%s1757 + $0x70] sm:$0xff]
        %v1773 = vld [vmem:[%s1757 + $0x78] sm:$0xff]
        %v1774 = vld [vmem:[%s1757 + $0x80] sm:$0xff]
        %v1775 = vld [vmem:[%s1757 + $0x88] sm:$0xff]
        %v1776 = vld [vmem:[%s1757 + $0x90] sm:$0xff]
        %v1777 = vld [vmem:[%s1757 + $0x98] sm:$0xff]
        %v1778 = vld [vmem:[%s1757 + $0xa0] sm:$0xff]
        %v1779 = vld [vmem:[%s1757 + $0xa8] sm:$0xff]
        %v1780 = vld [vmem:[%s1757 + $0xb0] sm:$0xff]
        %v1781 = vld [vmem:[%s1757 + $0xb8] sm:$0xff]
        %v1782 = vld [vmem:[%s1757 + $0xc0] sm:$0xff]
        %v1783 = vld [vmem:[%s1757 + $0xc8] sm:$0xff]
        %v1784 = vld [vmem:[%s1757 + $0xd0] sm:$0xff]
        %v1785 = vld [vmem:[%s1757 + $0xd8] sm:$0xff]
        %v1786 = vld [vmem:[%s1757 + $0xe0] sm:$0xff]
        %v1787 = vld [vmem:[%s1757 + $0xe8] sm:$0xff]
        %v1788 = vld [vmem:[%s1757 + $0xf0] sm:$0xff]
        %v1789 = vld [vmem:[%s1757 + $0xf8] sm:$0xff]
        %v1790 = vlaneseq
        %v1791 = vshrl.u32 %v1790, 7
        %v1792 = vsub.s32 7, %v1791
        %v1793 = vrot.slane %v343, %v1792
        %v1794 = vlaneseq
        %v1795 = vshrl.u32 %v1794, 7
        %v1796 = vsub.s32 7, %v1795
        %v1797 = vrot.slane %v344, %v1796
        %1798 = vmatprep.subr.mxu0 %v1789
        %1799 = vmatpush1.msra.mxu0 %v1788
        %1800 = vmatprep.subr.mxu0 %v1787
        %1801 = vmatpush1.msra.mxu0 %v1786
        %1802 = vmatprep.subr.mxu0 %v1785
        %1803 = vmatpush1.msra.mxu0 %v1784
        %1804 = vmatprep.subr.mxu0 %v1783
        %1805 = vmatpush1.msra.mxu0 %v1782
        %1806 = vmatprep.subr.mxu0 %v1781
        %1807 = vmatpush1.msra.mxu0 %v1780
        %1808 = vmatprep.subr.mxu0 %v1779
        %1809 = vmatpush1.msra.mxu0 %v1778
        %1810 = vmatprep.subr.mxu0 %v1777
        %1811 = vmatpush1.msra.mxu0 %v1776
        %1812 = vmatprep.subr.mxu0 %v1775
        %1813 = vmatpush1.msra.mxu0 %v1774
        %1814 = vmatprep.subr.mxu0 %v1773
        %1815 = vmatpush1.msra.mxu0 %v1772
        %1816 = vmatprep.subr.mxu0 %v1771
        %1817 = vmatpush1.msra.mxu0 %v1770
        %1818 = vmatprep.subr.mxu0 %v1769
        %1819 = vmatpush1.msra.mxu0 %v1768
        %1820 = vmatprep.subr.mxu0 %v1767
        %1821 = vmatpush1.msra.mxu0 %v1766
        %1822 = vmatprep.subr.mxu0 %v1765
        %1823 = vmatpush1.msra.mxu0 %v1764
        %1824 = vmatprep.subr.mxu0 %v1763
        %1825 = vmatpush1.msra.mxu0 %v1762
        %1826 = vmatprep.subr.mxu0 %v1761
        %1827 = vmatpush1.msra.mxu0 %v1760
        %1828 = vmatprep.subr.mxu0 %v1759
        %1829 = vmatpush1.msra.mxu0 %v1758
        %1830 = vmatprep.subr.mxu0 0.0
        %1831 = vmatpush2.msra.mxu0 0.0
        %1832 = vmatprep.subr.mxu0 0.0
        %1833 = vmatpush2.msra.mxu0 0.0
        %1834 = vmatprep.subr.mxu0 0.0
        %1835 = vmatpush2.msra.mxu0 0.0
        %1836 = vmatprep.subr.mxu0 0.0
        %1837 = vmatpush2.msra.mxu0 0.0
        %1838 = vmatprep.subr.mxu0 0.0
        %1839 = vmatpush2.msra.mxu0 0.0
        %1840 = vmatprep.subr.mxu0 0.0
        %1841 = vmatpush2.msra.mxu0 0.0
        %1842 = vmatprep.subr.mxu0 0.0
        %1843 = vmatpush2.msra.mxu0 0.0
        %1844 = vmatprep.subr.mxu0 0.0
        %1845 = vmatpush2.msra.mxu0 0.0
        %1846 = vmatprep.subr.mxu0 0.0
        %1847 = vmatpush2.msra.mxu0 0.0
        %1848 = vmatprep.subr.mxu0 0.0
        %1849 = vmatpush2.msra.mxu0 0.0
        %1850 = vmatprep.subr.mxu0 0.0
        %1851 = vmatpush2.msra.mxu0 0.0
        %1852 = vmatprep.subr.mxu0 0.0
        %1853 = vmatpush2.msra.mxu0 0.0
        %1854 = vmatprep.subr.mxu0 0.0
        %1855 = vmatpush2.msra.mxu0 0.0
        %1856 = vmatprep.subr.mxu0 0.0
        %1857 = vmatpush2.msra.mxu0 0.0
        %1858 = vmatprep.subr.mxu0 0.0
        %1859 = vmatpush2.msra.mxu0 0.0
        %1860 = vmatprep.subr.mxu0 0.0
        %1861 = vmatpush2.msra.mxu0 0.0
        %1862 = vmatprep.mubr.f32.mxu0 0.0
        %1863 = vmatmul.mubr.f32.gmra.mxu0 %v339
        %v1864 = vpop.f32.mrf.mxu0
        %v1865 = vadd.f32 %v1793, %v1864
        %v1866 = vpop.f32.mrf.mxu0
        %v1867 = vadd.f32 %v1797, %v1866
        %1868 = vmatprep.mubr.f32.mxu0 0.0
        %1869 = vmatmul.mubr.f32.gmra.mxu0 %v340
        %v1870 = vpop.f32.mrf.mxu0
        %v1871 = vadd.f32 %v1793, %v1870
        %v1872 = vpop.f32.mrf.mxu0
        %v1873 = vadd.f32 %v1797, %v1872
        %1874 = vmatprep.mubr.f32.mxu0 0.0
        %1875 = vmatmul.mubr.f32.gmra.mxu0 %v341
        %v1876 = vpop.f32.mrf.mxu0
        %v1877 = vadd.f32 %v1793, %v1876
        %v1878 = vpop.f32.mrf.mxu0
        %v1879 = vadd.f32 %v1797, %v1878
        %1880 = vmatprep.mubr.f32.mxu0 0.0
        %1881 = vmatmul.mubr.f32.gmra.mxu0 %v342
        %v1882 = vpop.f32.mrf.mxu0
        %v1883 = vadd.f32 %v1793, %v1882
        %v1884 = vpop.f32.mrf.mxu0
        %v1885 = vadd.f32 %v1797, %v1884
        %1886 = vdwg.mxu0
        %v1887 = vxor.u32 %v1865, 2147483648
        %v1888 = vxor.u32 %v1867, 2147483648
        %v1889 = vxor.u32 %v1871, 2147483648
        %v1890 = vxor.u32 %v1873, 2147483648
        %v1891 = vxor.u32 %v1877, 2147483648
        %v1892 = vxor.u32 %v1879, 2147483648
        %v1893 = vxor.u32 %v1883, 2147483648
        %v1894 = vxor.u32 %v1885, 2147483648
        %v1895 = vmul.f32 %v1887, 1.442695
        %v1896 = vpow.pop %v1895
        %v1897 = vmul.f32 %v1888, 1.442695
        %v1898 = vpow.pop %v1897
        %v1899 = vmul.f32 %v1889, 1.442695
        %v1900 = vpow.pop %v1899
        %v1901 = vmul.f32 %v1890, 1.442695
        %v1902 = vpow.pop %v1901
        %v1903 = vmul.f32 %v1891, 1.442695
        %v1904 = vpow.pop %v1903
        %v1905 = vmul.f32 %v1892, 1.442695
        %v1906 = vpow.pop %v1905
        %v1907 = vmul.f32 %v1893, 1.442695
        %v1908 = vpow.pop %v1907
        %v1909 = vmul.f32 %v1894, 1.442695
        %v1910 = vpow.pop %v1909
        %v1911 = vadd.f32 %v1896, 1.0
        %v1912 = vadd.f32 %v1898, 1.0
        %v1913 = vadd.f32 %v1900, 1.0
        %v1914 = vadd.f32 %v1902, 1.0
        %v1915 = vadd.f32 %v1904, 1.0
        %v1916 = vadd.f32 %v1906, 1.0
        %v1917 = vadd.f32 %v1908, 1.0
        %v1918 = vadd.f32 %v1910, 1.0
        %v1919 = vrcp.pop %v1911
        %v1920 = vmul.f32 1.0, %v1919
        %v1921 = vrcp.pop %v1912
        %v1922 = vmul.f32 1.0, %v1921
        %v1923 = vrcp.pop %v1913
        %v1924 = vmul.f32 1.0, %v1923
        %v1925 = vrcp.pop %v1914
        %v1926 = vmul.f32 1.0, %v1925
        %v1927 = vrcp.pop %v1915
        %v1928 = vmul.f32 1.0, %v1927
        %v1929 = vrcp.pop %v1916
        %v1930 = vmul.f32 1.0, %v1929
        %v1931 = vrcp.pop %v1917
        %v1932 = vmul.f32 1.0, %v1931
        %v1933 = vrcp.pop %v1918
        %v1934 = vmul.f32 1.0, %v1933
        %v1935 = vlaneseq
        %v1936 = vshrl.u32 %v1935, 7
        %v1937 = vsub.s32 6, %v1936
        %v1938 = vrot.slane %v346, %v1937
        %v1939 = vmul.f32 %v1920, %v1938
        %v1940 = vmul.f32 %v1924, %v1938
        %v1941 = vmul.f32 %v1928, %v1938
        %v1942 = vmul.f32 %v1932, %v1938
        %v1943 = vadd.f32 %v1753, %v1939
        %v1944 = vadd.f32 %v1754, %v1940
        %v1945 = vadd.f32 %v1755, %v1941
        %v1946 = vadd.f32 %v1756, %v1942
        %v1947 = vlaneseq
        %v1948 = vshrl.u32 %v1947, 7
        %v1949 = vsub.s32 7, %v1948
        %v1950 = vrot.slane %v346, %v1949
        %v1951 = vmul.f32 %v1922, %v1950
        %v1952 = vmul.f32 %v1926, %v1950
        %v1953 = vmul.f32 %v1930, %v1950
        %v1954 = vmul.f32 %v1934, %v1950
        %v1955 = vadd.f32 %v1943, %v1951
        %v1956 = vadd.f32 %v1944, %v1952
        %v1957 = vadd.f32 %v1945, %v1953
        %v1958 = vadd.f32 %v1946, %v1954
        %v1960 = vlaneseq
        %v1961 = vshrl.u32 %v1960, 7
        %v1962 = vsub.s32 0, %v1961
        %v1963 = vrot.slane %v347, %v1962
        %v1965 = vadd.f32 %v1955, %v1963
        %v1966 = vadd.f32 %v1956, %v1963
        %v1967 = vadd.f32 %v1957, %v1963
        %v1968 = vadd.f32 %v1958, %v1963
        %1969 = vst [vmem:[%s333] sm:$0xff] %v1965
        %1970 = vst [vmem:[%s333 + $0x8] sm:$0xff] %v1966
        %1971 = vst [vmem:[%s333 + $0x10] sm:$0xff] %v1967
        %1972 = vst [vmem:[%s333 + $0x18] sm:$0xff] %v1968
        %s1973 = sand.u32 %s176, 1
        %s1974 = scalar_lea.sflag [#allocation4], %s1973
        %s1975 = sand.u32 %s176, 1
        %s1976 = smul.addr %s1975, 32
        %s1977 = scalar_lea.vmem [#allocation10], %s1976
        // Predicated region
        $region57: #{tpu_custom_call.1} parent=39 // pred_check
          %p1978 = pneg %p186
        $region58: #{tpu_custom_call.1} parent=39 // pred_check_branch
          %1980 = sbr.rel (%p1978) target = $region60
        $region59: #{tpu_custom_call.1} parent=39 // pred_region
          %s1981 = smul.u32 4, %s29
          %s1983 = ssub.s32 512, 512
          %1984 = vsyncadd %s1974, %s1983
          %s1985 = sadd.s32 %s28, %s1981
          %s1986 = smul.addr %s1985, 128
          %s1987 = scalar_lea.hbm %s5, %s1986
          %s1988 = sshll.u32 %s1977, 4
          %s1989 = int_to_ptr.vmem [resolvable:$true] %s1988
          %1994 = dma.vmem_to_hbm [thread:$0]  %s1989, 512, %s1987, %s1974, 128, 128, 8
        $region60: #{tpu_custom_call.1} parent=39 // pred_fallthru
          _
      $region40: #{tpu_custom_call.1} parent=5 // pred_fallthru
        _
      %p1995 = scmp.le.s32.totalorder 2, %s19
      // Predicated region
      $region61: #{tpu_custom_call.1} parent=5 // pred_check
        %p1996 = pneg %p1995
      $region62: #{tpu_custom_call.1} parent=5 // pred_check_branch
        %1998 = sbr.rel (%p1996) target = $region64
      $region63: #{tpu_custom_call.1} parent=5 // pred_region
        %s1999 = ssub.s32 %s19, 2
        // Predicated region
        $region65: #{tpu_custom_call.1} parent=63 // pred_check
          %p2000 = pneg %p192
        $region66: #{tpu_custom_call.1} parent=63 // pred_check_branch
          %2002 = sbr.rel (%p2000) target = $region68
        $region67: #{tpu_custom_call.1} parent=63 // pred_region
          %s2003 = sand.u32 %s177, 1
          %s2004 = scalar_lea.sflag [#allocation4], %s2003
          %s2005 = sand.u32 %s177, 1
          %s2006 = smul.addr %s2005, 32
          %s2007 = scalar_lea.vmem [#allocation10], %s2006
          %2008 = dma.done %s2004, 512
        $region68: #{tpu_custom_call.1} parent=63 // pred_fallthru
          _
      $region64: #{tpu_custom_call.1} parent=5 // pred_fallthru
        _
    $region6: #{tpu_custom_call.1} parent=1 // loop_footer
      %s23 = sadd.s32 1, %s19
    $region7: #{tpu_custom_call.1} parent=1 // loop_footer_branch
      %18 = sbr.rel target = $region3
    $region8: #{tpu_custom_call.1} parent=1 // loop_exit
      _
    %2009 = vsyncpa [#allocation3], 1
    %s2010 = scalar_lea.sflag [#allocation3], 1
    %2011 = vsyncpa %s2010, 1
    %2012 = vsyncpa [#allocation6], 1
    %2013 = vsyncpa [#allocation9], 1
    %2014 = vsyncpa [#allocation4], 1
    %s2015 = scalar_lea.sflag [#allocation4], 1
    %2016 = vsyncpa %s2015, 1

</llo_original>
